<compile_context>
chip_gen: v7x
topology: tpu7x:2x2x1
jax: 0.10.0
libtpu: 0.0.40
codegen_flags: <defaults>
</compile_context>

<pallas_src>
import functools
import math

import numpy as np
import jax
import jax.numpy as jnp
from jax.experimental import pallas as pl
from jax.experimental.pallas import tpu as pltpu


# ----------------------------------------------------------------------------
# Host-side (weight-only) preprocessing: 1-D conv -> dense GEMM.
# ----------------------------------------------------------------------------
def _conv1d_as_matmul(w, b, w_in, stride, pad, dilation):
    """Express y[co, o] = b[co] + sum_{ci,k} x[ci, o*stride + k*dilation - pad] * w[co, ci, k]
    as y_flat = x_flat @ M + bvec with
      x_flat[j*C_in + ci] = x[ci, j]   (width-major, channel-minor)
      y_flat[o*C_out + co] = y[co, o]
    Zero padding is folded into M (padded taps simply contribute nothing)."""
    c_out, c_in, k = w.shape
    eff = (k - 1) * dilation + 1
    w_out = (w_in + 2 * pad - eff) // stride + 1
    m = np.zeros((w_in * c_in, w_out * c_out), np.float32)
    wt = np.asarray(w, np.float32).transpose(1, 0, 2)  # (C_in, C_out, K)
    for o in range(w_out):
        for kk in range(k):
            j = o * stride + kk * dilation - pad
            if 0 <= j < w_in:
                m[j * c_in:(j + 1) * c_in, o * c_out:(o + 1) * c_out] = wt[:, :, kk]
    bvec = np.tile(np.asarray(b, np.float32), w_out)
    return m, bvec, w_out


# ----------------------------------------------------------------------------
# Pallas kernel: whole forward pass for one batch element (all H rows at once).
# ----------------------------------------------------------------------------
def _ecnn_kernel(x_ref, m1_ref, b1_ref, m2_ref, b2_ref, m3_ref, b3_ref,
                 w1_ref, bf1_ref, w2_ref, bf2_ref, o_ref, *, rows, fc1_in_per_row):
    x = x_ref[0]                                                        # (H, W*Cin)

    # conv1 + relu  (GEMM over all H rows at once)
    a1 = jnp.dot(x, m1_ref[...], preferred_element_type=jnp.float32) + b1_ref[...]
    a1 = jnp.maximum(a1, 0.0)                                           # (H, W1*planes)

    # conv2_l1 / l2 / l3 + relu + channel concat, fused into one wide GEMM
    u = jnp.dot(a1, m2_ref[...], preferred_element_type=jnp.float32) + b2_ref[...]
    u = jnp.maximum(u, 0.0)                                             # (H, W2*6*planes)

    # conv3 + relu (kernel spans the full remaining width -> dense GEMM)
    a3 = jnp.dot(u, m3_ref[...], preferred_element_type=jnp.float32) + b3_ref[...]
    a3 = jnp.maximum(a3, 0.0)                                           # (H, 6*planes)

    # flatten over height + fc1 (fc1 columns were pre-permuted host-side to the
    # kernel's (h-major, channel-minor) layout, so this is a plain accumulation)
    w1 = w1_ref[...]                                                    # (H*6p, 4p)
    h1 = bf1_ref[...]                                                   # (1, 4p)
    for h in range(rows):
        h1 = h1 + jnp.dot(a3[h:h + 1, :],
                          w1[h * fc1_in_per_row:(h + 1) * fc1_in_per_row, :],
                          preferred_element_type=jnp.float32)

    # fc2
    out = jnp.dot(h1, w2_ref[...], preferred_element_type=jnp.float32) + bf2_ref[...]
    o_ref[0] = out.astype(o_ref.dtype)


# ----------------------------------------------------------------------------
# Wrapper
# ----------------------------------------------------------------------------
def ecnn_base_cm_pallas(x, params, dilations):
    B, c_in, H, W = x.shape
    w1c = np.asarray(params["conv1_w"])
    planes, ks = w1c.shape[0], w1c.shape[-1]
    c2 = 2 * planes
    c3 = 6 * planes

    # conv1 -> GEMM
    M1, b1v, W1o = _conv1d_as_matmul(w1c.reshape(planes, c_in, ks),
                                     params["conv1_b"], W, 2, 0, 1)

    # conv2 branches -> one fused GEMM (== torch.cat along channels)
    pads = (0, 15, 25)
    mats, bvs, wouts = [], [], []
    for i in range(3):
        wb = np.asarray(params[f"conv2_{i + 1}_w"])
        M, bv, wo = _conv1d_as_matmul(wb.reshape(wb.shape[0], wb.shape[1], wb.shape[-1]),
                                      params[f"conv2_{i + 1}_b"], W1o, 2,
                                      pads[i], dilations[i])
        mats.append(M); bvs.append(bv); wouts.append(wo)
    assert wouts[0] == wouts[1] == wouts[2], "branch output widths must match for concat"
    W2o = wouts[0]
    M2 = np.concatenate(mats, axis=1)
    b2v = np.concatenate(bvs)
    # permute columns to (position-major, concatenated-channel-minor) = conv3 input order
    perm = np.array([br * (W2o * c2) + o * c2 + c
                     for o in range(W2o) for br in range(3) for c in range(c2)])
    M2 = M2[:, perm]
    b2v = b2v[perm]

    # conv3 -> GEMM (output width must be 1, matching the module's fc1 sizing)
    w3 = np.asarray(params["conv3_w"])
    M3, b3v, W3o = _conv1d_as_matmul(w3.reshape(c3, c3, w3.shape[-1]),
                                     params["conv3_b"], W2o, 1, 0, 1)
    assert W3o == 1

    # fc1: reorder its columns from PyTorch's channel-major flatten (c*H + h)
    # to the kernel's (h*6p + c) layout; fc2: plain transpose.
    wf1 = np.asarray(params["fc1_w"])                                   # (4p, 6p*H)
    wf1_r = wf1.reshape(wf1.shape[0], c3, H).transpose(2, 1, 0).reshape(H * c3, wf1.shape[0])
    wf2_t = np.asarray(params["fc2_w"]).T                               # (4p, num_classes)
    num_classes = wf2_t.shape[1]

    # Lane-dense activation slabs: one (H, W*Cin) row-block per batch element.
    xt = jnp.transpose(x, (0, 2, 3, 1)).reshape(B, H, W * c_in)

    dev = lambda a: jnp.asarray(a, jnp.float32)
    args = (xt,
            dev(M1), dev(b1v[None, :]),
            dev(M2), dev(b2v[None, :]),
            dev(M3), dev(b3v[None, :]),
            dev(wf1_r), dev(np.asarray(params["fc1_b"])[None, :]),
            dev(wf2_t), dev(np.asarray(params["fc2_b"])[None, :]))

    kernel = functools.partial(_ecnn_kernel, rows=H, fc1_in_per_row=c3)

    def full(shape):
        return pl.BlockSpec(shape, lambda b, _n=len(shape): (0,) * _n)

    out = pl.pallas_call(
        kernel,
        out_shape=jax.ShapeDtypeStruct((B, 1, num_classes), x.dtype),
        grid=(B,),
        in_specs=[
            pl.BlockSpec((1, H, W * c_in), lambda b: (b, 0, 0)),
            full(M1.shape), full((1, M1.shape[1])),
            full(M2.shape), full((1, M2.shape[1])),
            full(M3.shape), full((1, M3.shape[1])),
            full(wf1_r.shape), full((1, wf1_r.shape[1])),
            full(wf2_t.shape), full((1, wf2_t.shape[1])),
        ],
        out_specs=pl.BlockSpec((1, 1, num_classes), lambda b: (b, 0, 0)),
        compiler_params=pltpu.CompilerParams(dimension_semantics=("parallel",)),
    )(*args)
    return out.reshape(B, num_classes)


# ----------------------------------------------------------------------------
# Pure-JAX reference mirroring the PyTorch forward.
# ----------------------------------------------------------------------------
def ecnn_base_cm_ref(x, params, dilations):
    def conv(t, w, b, stride_w, pad_w, dil_w):
        y = jax.lax.conv_general_dilated(
            t, w, window_strides=(1, stride_w),
            padding=((0, 0), (pad_w, pad_w)),
            rhs_dilation=(1, dil_w),
            dimension_numbers=("NCHW", "OIHW", "NCHW"))
        return y + b.reshape(1, -1, 1, 1)

    relu = lambda t: jnp.maximum(t, 0.0)
    a = relu(conv(x, params["conv1_w"], params["conv1_b"], 2, 0, 1))
    m1 = relu(conv(a, params["conv2_1_w"], params["conv2_1_b"], 2, 0, dilations[0]))
    m2 = relu(conv(a, params["conv2_2_w"], params["conv2_2_b"], 2, 15, dilations[1]))
    m3 = relu(conv(a, params["conv2_3_w"], params["conv2_3_b"], 2, 25, dilations[2]))
    c = jnp.concatenate([m1, m2, m3], axis=1)
    c = relu(conv(c, params["conv3_w"], params["conv3_b"], 1, 0, 1))
    v = c.reshape(c.shape[0], -1)
    h = v @ params["fc1_w"].T + params["fc1_b"]
    return h @ params["fc2_w"].T + params["fc2_b"]


if __name__ == "__main__":
    # Small shapes consistent with the module: conv2 kernels are 85/115/135 wide,
    # so input_width must satisfy (W - ks)//2 + 1 >= 85.  W=179, ks=3 -> 89 -> 3 -> 1.
    num_classes, planes, ks = 5, 4, 3
    input_height, input_width = 8, 179
    dilations = (1, 1, 1)
    B = 2
    p = planes

    key = jax.random.PRNGKey(0)
    keys = jax.random.split(key, 15)

    def unif(k, shape, fan_in):
        bound = 1.0 / math.sqrt(fan_in)
        return jax.random.uniform(k, shape, jnp.float32, -bound, bound)

    params = {
        "conv1_w": unif(keys[0], (p, 3, 1, ks), 3 * ks),
        "conv1_b": unif(keys[1], (p,), 3 * ks),
        "conv2_1_w": unif(keys[2], (2 * p, p, 1, 85), p * 85),
        "conv2_1_b": unif(keys[3], (2 * p,), p * 85),
        "conv2_2_w": unif(keys[4], (2 * p, p, 1, 115), p * 115),
        "conv2_2_b": unif(keys[5], (2 * p,), p * 115),
        "conv2_3_w": unif(keys[6], (2 * p, p, 1, 135), p * 135),
        "conv2_3_b": unif(keys[7], (2 * p,), p * 135),
        "conv3_w": unif(keys[8], (6 * p, 6 * p, 1, 3), 6 * p * 3),
        "conv3_b": unif(keys[9], (6 * p,), 6 * p * 3),
        "fc1_w": unif(keys[10], (4 * p, 6 * p * input_height), 6 * p * input_height),
        "fc1_b": unif(keys[11], (4 * p,), 6 * p * input_height),
        "fc2_w": unif(keys[12], (num_classes, 4 * p), 4 * p),
        "fc2_b": unif(keys[13], (num_classes,), 4 * p),
    }
    x = jax.random.normal(keys[14], (B, 3, input_height, input_width), jnp.float32)

    out = ecnn_base_cm_pallas(x, params, dilations)
    out = jax.block_until_ready(out)
    ref = ecnn_base_cm_ref(x, params, dilations)

    assert out.shape == (B, num_classes), out.shape
    # Tolerance allows for MXU default-precision (bf16-pass) matmuls in the kernel
    # vs. XLA's conv path in the reference; a structural/ordering bug would be O(1).
    max_err = float(jnp.max(jnp.abs(out - ref)))
    assert jnp.allclose(out, ref, atol=2e-2, rtol=2e-2), f"mismatch vs reference, max_err={max_err}"

    print("KERNEL_OK")
</pallas_src>

<mosaic_0001>
module attributes {stable_mosaic.version = 11 : i64} {
  func.func @_ecnn_kernel(%arg0: i32, %arg1: memref<1x8x537xf32, #tpu.memory_space<vmem>>, %arg2: memref<537x356xf32, #tpu.memory_space<vmem>>, %arg3: memref<1x356xf32, #tpu.memory_space<vmem>>, %arg4: memref<356x72xf32, #tpu.memory_space<vmem>>, %arg5: memref<1x72xf32, #tpu.memory_space<vmem>>, %arg6: memref<72x24xf32, #tpu.memory_space<vmem>>, %arg7: memref<1x24xf32, #tpu.memory_space<vmem>>, %arg8: memref<192x16xf32, #tpu.memory_space<vmem>>, %arg9: memref<1x16xf32, #tpu.memory_space<vmem>>, %arg10: memref<16x5xf32, #tpu.memory_space<vmem>>, %arg11: memref<1x5xf32, #tpu.memory_space<vmem>>, %arg12: memref<1x1x5xf32, #tpu.memory_space<vmem>>) attributes {dimension_semantics = [#tpu.dimension_semantics<parallel>], iteration_bounds = array<i64: 2>, scalar_prefetch = 0 : i64, scratch_operands = 0 : i64, tpu.core_type = #tpu.core_type<tc>, window_params = [{transform_indices = @transform_0, window_bounds = array<i64: 1, 8, 537>}, {pipeline_mode = #tpu.pipeline_mode<synchronous>, transform_indices = @transform_1, window_bounds = array<i64: 537, 356>}, {pipeline_mode = #tpu.pipeline_mode<synchronous>, transform_indices = @transform_2, window_bounds = array<i64: 1, 356>}, {pipeline_mode = #tpu.pipeline_mode<synchronous>, transform_indices = @transform_3, window_bounds = array<i64: 356, 72>}, {pipeline_mode = #tpu.pipeline_mode<synchronous>, transform_indices = @transform_4, window_bounds = array<i64: 1, 72>}, {pipeline_mode = #tpu.pipeline_mode<synchronous>, transform_indices = @transform_5, window_bounds = array<i64: 72, 24>}, {pipeline_mode = #tpu.pipeline_mode<synchronous>, transform_indices = @transform_6, window_bounds = array<i64: 1, 24>}, {pipeline_mode = #tpu.pipeline_mode<synchronous>, transform_indices = @transform_7, window_bounds = array<i64: 192, 16>}, {pipeline_mode = #tpu.pipeline_mode<synchronous>, transform_indices = @transform_8, window_bounds = array<i64: 1, 16>}, {pipeline_mode = #tpu.pipeline_mode<synchronous>, transform_indices = @transform_9, window_bounds = array<i64: 16, 5>}, {pipeline_mode = #tpu.pipeline_mode<synchronous>, transform_indices = @transform_10, window_bounds = array<i64: 1, 5>}, {transform_indices = @transform_11, window_bounds = array<i64: 1, 1, 5>}]} {
    %c0 = arith.constant 0 : index
    %c0_0 = arith.constant 0 : index
    %c0_1 = arith.constant 0 : index
    %0 = vector.load %arg1[%c0, %c0_0, %c0_1] : memref<1x8x537xf32, #tpu.memory_space<vmem>>, vector<1x8x537xf32>
    %1 = vector.shape_cast %0 : vector<1x8x537xf32> to vector<8x537xf32>
    %c0_2 = arith.constant 0 : index
    %c0_3 = arith.constant 0 : index
    %2 = vector.load %arg2[%c0_2, %c0_3] : memref<537x356xf32, #tpu.memory_space<vmem>>, vector<537x356xf32>
    %cst = arith.constant dense<0.000000e+00> : vector<8x356xf32>
    %3 = tpu.matmul %1, %2, %cst {dimension_numbers = #tpu.dot_dimension_numbers<[1], [0], [0], [1], [0, 0, 1, 1], [], []>} : vector<8x537xf32>, vector<537x356xf32>, vector<8x356xf32> -> vector<8x356xf32>
    %c0_4 = arith.constant 0 : index
    %c0_5 = arith.constant 0 : index
    %4 = vector.load %arg3[%c0_4, %c0_5] : memref<1x356xf32, #tpu.memory_space<vmem>>, vector<1x356xf32>
    %5 = vector.broadcast %4 : vector<1x356xf32> to vector<8x356xf32>
    %6 = arith.addf %3, %5 : vector<8x356xf32>
    %cst_6 = arith.constant 0.000000e+00 : f32
    %7 = vector.broadcast %cst_6 : f32 to vector<8x356xf32>
    %8 = arith.maximumf %6, %7 : vector<8x356xf32>
    %c0_7 = arith.constant 0 : index
    %c0_8 = arith.constant 0 : index
    %9 = vector.load %arg4[%c0_7, %c0_8] : memref<356x72xf32, #tpu.memory_space<vmem>>, vector<356x72xf32>
    %cst_9 = arith.constant dense<0.000000e+00> : vector<8x72xf32>
    %10 = tpu.matmul %8, %9, %cst_9 {dimension_numbers = #tpu.dot_dimension_numbers<[1], [0], [0], [1], [0, 0, 1, 1], [], []>} : vector<8x356xf32>, vector<356x72xf32>, vector<8x72xf32> -> vector<8x72xf32>
    %c0_10 = arith.constant 0 : index
    %c0_11 = arith.constant 0 : index
    %11 = vector.load %arg5[%c0_10, %c0_11] : memref<1x72xf32, #tpu.memory_space<vmem>>, vector<1x72xf32>
    %12 = vector.broadcast %11 : vector<1x72xf32> to vector<8x72xf32>
    %13 = arith.addf %10, %12 : vector<8x72xf32>
    %cst_12 = arith.constant 0.000000e+00 : f32
    %14 = vector.broadcast %cst_12 : f32 to vector<8x72xf32>
    %15 = arith.maximumf %13, %14 : vector<8x72xf32>
    %c0_13 = arith.constant 0 : index
    %c0_14 = arith.constant 0 : index
    %16 = vector.load %arg6[%c0_13, %c0_14] : memref<72x24xf32, #tpu.memory_space<vmem>>, vector<72x24xf32>
    %cst_15 = arith.constant dense<0.000000e+00> : vector<8x24xf32>
    %17 = tpu.matmul %15, %16, %cst_15 {dimension_numbers = #tpu.dot_dimension_numbers<[1], [0], [0], [1], [0, 0, 1, 1], [], []>} : vector<8x72xf32>, vector<72x24xf32>, vector<8x24xf32> -> vector<8x24xf32>
    %c0_16 = arith.constant 0 : index
    %c0_17 = arith.constant 0 : index
    %18 = vector.load %arg7[%c0_16, %c0_17] : memref<1x24xf32, #tpu.memory_space<vmem>>, vector<1x24xf32>
    %19 = vector.broadcast %18 : vector<1x24xf32> to vector<8x24xf32>
    %20 = arith.addf %17, %19 : vector<8x24xf32>
    %cst_18 = arith.constant 0.000000e+00 : f32
    %21 = vector.broadcast %cst_18 : f32 to vector<8x24xf32>
    %22 = arith.maximumf %20, %21 : vector<8x24xf32>
    %c0_19 = arith.constant 0 : index
    %c0_20 = arith.constant 0 : index
    %23 = vector.load %arg8[%c0_19, %c0_20] : memref<192x16xf32, #tpu.memory_space<vmem>>, vector<192x16xf32>
    %c0_21 = arith.constant 0 : index
    %c0_22 = arith.constant 0 : index
    %24 = vector.load %arg9[%c0_21, %c0_22] : memref<1x16xf32, #tpu.memory_space<vmem>>, vector<1x16xf32>
    %25 = vector.extract_strided_slice %22 {offsets = [0, 0], sizes = [1, 24], strides = [1, 1]} : vector<8x24xf32> to vector<1x24xf32>
    %26 = vector.extract_strided_slice %23 {offsets = [0, 0], sizes = [24, 16], strides = [1, 1]} : vector<192x16xf32> to vector<24x16xf32>
    %cst_23 = arith.constant dense<0.000000e+00> : vector<1x16xf32>
    %27 = tpu.matmul %25, %26, %cst_23 {dimension_numbers = #tpu.dot_dimension_numbers<[1], [0], [0], [1], [0, 0, 1, 1], [], []>} : vector<1x24xf32>, vector<24x16xf32>, vector<1x16xf32> -> vector<1x16xf32>
    %28 = arith.addf %24, %27 : vector<1x16xf32>
    %29 = vector.extract_strided_slice %22 {offsets = [1, 0], sizes = [1, 24], strides = [1, 1]} : vector<8x24xf32> to vector<1x24xf32>
    %30 = vector.extract_strided_slice %23 {offsets = [24, 0], sizes = [24, 16], strides = [1, 1]} : vector<192x16xf32> to vector<24x16xf32>
    %cst_24 = arith.constant dense<0.000000e+00> : vector<1x16xf32>
    %31 = tpu.matmul %29, %30, %cst_24 {dimension_numbers = #tpu.dot_dimension_numbers<[1], [0], [0], [1], [0, 0, 1, 1], [], []>} : vector<1x24xf32>, vector<24x16xf32>, vector<1x16xf32> -> vector<1x16xf32>
    %32 = arith.addf %28, %31 : vector<1x16xf32>
    %33 = vector.extract_strided_slice %22 {offsets = [2, 0], sizes = [1, 24], strides = [1, 1]} : vector<8x24xf32> to vector<1x24xf32>
    %34 = vector.extract_strided_slice %23 {offsets = [48, 0], sizes = [24, 16], strides = [1, 1]} : vector<192x16xf32> to vector<24x16xf32>
    %cst_25 = arith.constant dense<0.000000e+00> : vector<1x16xf32>
    %35 = tpu.matmul %33, %34, %cst_25 {dimension_numbers = #tpu.dot_dimension_numbers<[1], [0], [0], [1], [0, 0, 1, 1], [], []>} : vector<1x24xf32>, vector<24x16xf32>, vector<1x16xf32> -> vector<1x16xf32>
    %36 = arith.addf %32, %35 : vector<1x16xf32>
    %37 = vector.extract_strided_slice %22 {offsets = [3, 0], sizes = [1, 24], strides = [1, 1]} : vector<8x24xf32> to vector<1x24xf32>
    %38 = vector.extract_strided_slice %23 {offsets = [72, 0], sizes = [24, 16], strides = [1, 1]} : vector<192x16xf32> to vector<24x16xf32>
    %cst_26 = arith.constant dense<0.000000e+00> : vector<1x16xf32>
    %39 = tpu.matmul %37, %38, %cst_26 {dimension_numbers = #tpu.dot_dimension_numbers<[1], [0], [0], [1], [0, 0, 1, 1], [], []>} : vector<1x24xf32>, vector<24x16xf32>, vector<1x16xf32> -> vector<1x16xf32>
    %40 = arith.addf %36, %39 : vector<1x16xf32>
    %41 = vector.extract_strided_slice %22 {offsets = [4, 0], sizes = [1, 24], strides = [1, 1]} : vector<8x24xf32> to vector<1x24xf32>
    %42 = vector.extract_strided_slice %23 {offsets = [96, 0], sizes = [24, 16], strides = [1, 1]} : vector<192x16xf32> to vector<24x16xf32>
    %cst_27 = arith.constant dense<0.000000e+00> : vector<1x16xf32>
    %43 = tpu.matmul %41, %42, %cst_27 {dimension_numbers = #tpu.dot_dimension_numbers<[1], [0], [0], [1], [0, 0, 1, 1], [], []>} : vector<1x24xf32>, vector<24x16xf32>, vector<1x16xf32> -> vector<1x16xf32>
    %44 = arith.addf %40, %43 : vector<1x16xf32>
    %45 = vector.extract_strided_slice %22 {offsets = [5, 0], sizes = [1, 24], strides = [1, 1]} : vector<8x24xf32> to vector<1x24xf32>
    %46 = vector.extract_strided_slice %23 {offsets = [120, 0], sizes = [24, 16], strides = [1, 1]} : vector<192x16xf32> to vector<24x16xf32>
    %cst_28 = arith.constant dense<0.000000e+00> : vector<1x16xf32>
    %47 = tpu.matmul %45, %46, %cst_28 {dimension_numbers = #tpu.dot_dimension_numbers<[1], [0], [0], [1], [0, 0, 1, 1], [], []>} : vector<1x24xf32>, vector<24x16xf32>, vector<1x16xf32> -> vector<1x16xf32>
    %48 = arith.addf %44, %47 : vector<1x16xf32>
    %49 = vector.extract_strided_slice %22 {offsets = [6, 0], sizes = [1, 24], strides = [1, 1]} : vector<8x24xf32> to vector<1x24xf32>
    %50 = vector.extract_strided_slice %23 {offsets = [144, 0], sizes = [24, 16], strides = [1, 1]} : vector<192x16xf32> to vector<24x16xf32>
    %cst_29 = arith.constant dense<0.000000e+00> : vector<1x16xf32>
    %51 = tpu.matmul %49, %50, %cst_29 {dimension_numbers = #tpu.dot_dimension_numbers<[1], [0], [0], [1], [0, 0, 1, 1], [], []>} : vector<1x24xf32>, vector<24x16xf32>, vector<1x16xf32> -> vector<1x16xf32>
    %52 = arith.addf %48, %51 : vector<1x16xf32>
    %53 = vector.extract_strided_slice %22 {offsets = [7, 0], sizes = [1, 24], strides = [1, 1]} : vector<8x24xf32> to vector<1x24xf32>
    %54 = vector.extract_strided_slice %23 {offsets = [168, 0], sizes = [24, 16], strides = [1, 1]} : vector<192x16xf32> to vector<24x16xf32>
    %cst_30 = arith.constant dense<0.000000e+00> : vector<1x16xf32>
    %55 = tpu.matmul %53, %54, %cst_30 {dimension_numbers = #tpu.dot_dimension_numbers<[1], [0], [0], [1], [0, 0, 1, 1], [], []>} : vector<1x24xf32>, vector<24x16xf32>, vector<1x16xf32> -> vector<1x16xf32>
    %56 = arith.addf %52, %55 : vector<1x16xf32>
    %c0_31 = arith.constant 0 : index
    %c0_32 = arith.constant 0 : index
    %57 = vector.load %arg10[%c0_31, %c0_32] : memref<16x5xf32, #tpu.memory_space<vmem>>, vector<16x5xf32>
    %cst_33 = arith.constant dense<0.000000e+00> : vector<1x5xf32>
    %58 = tpu.matmul %56, %57, %cst_33 {dimension_numbers = #tpu.dot_dimension_numbers<[1], [0], [0], [1], [0, 0, 1, 1], [], []>} : vector<1x16xf32>, vector<16x5xf32>, vector<1x5xf32> -> vector<1x5xf32>
    %c0_34 = arith.constant 0 : index
    %c0_35 = arith.constant 0 : index
    %59 = vector.load %arg11[%c0_34, %c0_35] : memref<1x5xf32, #tpu.memory_space<vmem>>, vector<1x5xf32>
    %60 = arith.addf %58, %59 : vector<1x5xf32>
    %c0_36 = arith.constant 0 : index
    %c0_37 = arith.constant 0 : index
    %c0_38 = arith.constant 0 : index
    %61 = vector.load %arg12[%c0_36, %c0_37, %c0_38] : memref<1x1x5xf32, #tpu.memory_space<vmem>>, vector<1x1x5xf32>
    %62 = vector.shape_cast %61 : vector<1x1x5xf32> to vector<1x5xf32>
    %63 = vector.shape_cast %60 : vector<1x5xf32> to vector<1x1x5xf32>
    tpu.vector_store %arg12[%c0_36, %c0_37, %c0_38], %63 {strides = array<i32>} : memref<1x1x5xf32, #tpu.memory_space<vmem>>, vector<1x1x5xf32>,
    return
  }
  func.func @transform_0(%arg0: i32) -> (i32, i32, i32) {
    %c0_i32 = arith.constant 0 : i32
    %c0_i32_0 = arith.constant 0 : i32
    %c0_i32_1 = arith.constant 0 : i32
    return %arg0, %c0_i32, %c0_i32_0 : i32, i32, i32
  }
  func.func @transform_1(%arg0: i32) -> (i32, i32) {
    %c0_i32 = arith.constant 0 : i32
    %c0_i32_0 = arith.constant 0 : i32
    %c0_i32_1 = arith.constant 0 : i32
    return %c0_i32, %c0_i32_0 : i32, i32
  }
  func.func @transform_2(%arg0: i32) -> (i32, i32) {
    %c0_i32 = arith.constant 0 : i32
    %c0_i32_0 = arith.constant 0 : i32
    %c0_i32_1 = arith.constant 0 : i32
    return %c0_i32, %c0_i32_0 : i32, i32
  }
  func.func @transform_3(%arg0: i32) -> (i32, i32) {
    %c0_i32 = arith.constant 0 : i32
    %c0_i32_0 = arith.constant 0 : i32
    %c0_i32_1 = arith.constant 0 : i32
    return %c0_i32, %c0_i32_0 : i32, i32
  }
  func.func @transform_4(%arg0: i32) -> (i32, i32) {
    %c0_i32 = arith.constant 0 : i32
    %c0_i32_0 = arith.constant 0 : i32
    %c0_i32_1 = arith.constant 0 : i32
    return %c0_i32, %c0_i32_0 : i32, i32
  }
  func.func @transform_5(%arg0: i32) -> (i32, i32) {
    %c0_i32 = arith.constant 0 : i32
    %c0_i32_0 = arith.constant 0 : i32
    %c0_i32_1 = arith.constant 0 : i32
    return %c0_i32, %c0_i32_0 : i32, i32
  }
  func.func @transform_6(%arg0: i32) -> (i32, i32) {
    %c0_i32 = arith.constant 0 : i32
    %c0_i32_0 = arith.constant 0 : i32
    %c0_i32_1 = arith.constant 0 : i32
    return %c0_i32, %c0_i32_0 : i32, i32
  }
  func.func @transform_7(%arg0: i32) -> (i32, i32) {
    %c0_i32 = arith.constant 0 : i32
    %c0_i32_0 = arith.constant 0 : i32
    %c0_i32_1 = arith.constant 0 : i32
    return %c0_i32, %c0_i32_0 : i32, i32
  }
  func.func @transform_8(%arg0: i32) -> (i32, i32) {
    %c0_i32 = arith.constant 0 : i32
    %c0_i32_0 = arith.constant 0 : i32
    %c0_i32_1 = arith.constant 0 : i32
    return %c0_i32, %c0_i32_0 : i32, i32
  }
  func.func @transform_9(%arg0: i32) -> (i32, i32) {
    %c0_i32 = arith.constant 0 : i32
    %c0_i32_0 = arith.constant 0 : i32
    %c0_i32_1 = arith.constant 0 : i32
    return %c0_i32, %c0_i32_0 : i32, i32
  }
  func.func @transform_10(%arg0: i32) -> (i32, i32) {
    %c0_i32 = arith.constant 0 : i32
    %c0_i32_0 = arith.constant 0 : i32
    %c0_i32_1 = arith.constant 0 : i32
    return %c0_i32, %c0_i32_0 : i32, i32
  }
  func.func @transform_11(%arg0: i32) -> (i32, i32, i32) {
    %c0_i32 = arith.constant 0 : i32
    %c0_i32_0 = arith.constant 0 : i32
    %c0_i32_1 = arith.constant 0 : i32
    return %arg0, %c0_i32, %c0_i32_0 : i32, i32, i32
  }
}

</mosaic_0001>

<llo_original>
// kernel: tpu_custom_call.1
$region0: #{tpu_custom_call.1}
  #allocation0 [shape = 'u32[]', space=smem, size = 0x4, offset = 0x4, fixed_abs, tag = 'smem constant byte address 0x4 - core index']
  #allocation1 [shape = 'u32[144,128]{1,0:T(1,128)}', space=vmem, size = 0x12000, scoped, tag = 'internal scratch']
  %s0 = inlined_call_operand.vmem [shape: f32[2,8,537], index: 0, kind: input, shape index: {}]
  %s1 = inlined_call_operand.hbm [shape: f32[537,356], index: 1, kind: input, shape index: {}]
  %s2 = inlined_call_operand.vmem [shape: f32[1,356], index: 2, kind: input, shape index: {}]
  %s3 = inlined_call_operand.vmem [shape: f32[356,72], index: 3, kind: input, shape index: {}]
  %s4 = inlined_call_operand.vmem [shape: f32[1,72], index: 4, kind: input, shape index: {}]
  %s5 = inlined_call_operand.vmem [shape: f32[72,24], index: 5, kind: input, shape index: {}]
  %s6 = inlined_call_operand.vmem [shape: f32[1,24], index: 6, kind: input, shape index: {}]
  %s7 = inlined_call_operand.vmem [shape: f32[192,16], index: 7, kind: input, shape index: {}]
  %s8 = inlined_call_operand.vmem [shape: f32[1,16], index: 8, kind: input, shape index: {}]
  %s9 = inlined_call_operand.vmem [shape: f32[16,5], index: 9, kind: input, shape index: {}]
  %s10 = inlined_call_operand.vmem [shape: f32[1,5], index: 10, kind: input, shape index: {}]
  %s11 = inlined_call_operand.hbm [shape: f32[2,1,5], index: 11, kind: output, shape index: {}]
  %s12 = sld [smem:[#allocation0]]
  $region81: #{tpu_custom_call.1} parent=0
    _
  %s14 = ssub.s32 1, %s12
  %s15 = scalar_select 0, %s14, %s12
  $region1: #{tpu_custom_call.1} parent=0
    #allocation2 [shape = 'u8[835584]{0}', space=vmem, size = 0xcc000, scoped, tag = 'input window, operand 1, single buffered']
    #allocation3 [shape = 's32[2]{0}', space=sflag, size = 0x8, scoped, tag = 'scoped memory for tpu_custom_call.1']
    #allocation4 [shape = 's32[2]{0}', space=sflag, size = 0x8, scoped, tag = 'scoped memory for tpu_custom_call.1']
    #allocation5 [shape = 'u8[1024]{0}', space=vmem, size = 0x400, scoped, tag = 'output window, operand 0']
    %16 = vsyncpa [#allocation3], 0
    %17 = vsyncpa [#allocation4], 0
    %s18 = scalar_lea.sflag [#allocation4], 1
    %19 = vsyncpa %s18, 0
    loop: start=0, step=1, limit=4
    $region2: #{tpu_custom_call.1} parent=1 // loop_pre_header
      _
    $region3: #{tpu_custom_call.1} parent=1 // loop_header
      %s21 = sphi 0, %s25
      %p22 = scmp.ge.s32.totalorder %s21, 4
      %s31 = sphi 0, %s33
      %s34 = sphi 0, %s31
      %s35 = sphi 0, %s34
      %s51 = sphi 0, %s35
      %s55 = sphi 0, %s55
      %s57 = sphi 0, %s55
      %s58 = sphi 0, %s57
      %s72 = sphi 0, %s58
      %s76 = sphi 0, %s76
      %s78 = sphi 0, %s76
      %s79 = sphi 0, %s78
      %s93 = sphi 0, %s79
      %s97 = sphi 0, %s97
      %s99 = sphi 0, %s97
      %s100 = sphi 0, %s99
      %s114 = sphi 0, %s100
      %s118 = sphi 0, %s118
      %s120 = sphi 0, %s118
      %s121 = sphi 0, %s120
      %s135 = sphi 0, %s121
      %s139 = sphi 0, %s139
      %s141 = sphi 0, %s139
      %s142 = sphi 0, %s141
      %s156 = sphi 0, %s142
      %s160 = sphi 0, %s160
      %s162 = sphi 0, %s160
      %s163 = sphi 0, %s162
      %s177 = sphi 0, %s163
      %s181 = sphi 0, %s181
      %s183 = sphi 0, %s181
      %s184 = sphi 0, %s183
      %s198 = sphi 0, %s184
      %s202 = sphi 0, %s202
      %s204 = sphi 0, %s202
      %s205 = sphi 0, %s204
      %s219 = sphi 0, %s205
      %s223 = sphi 0, %s223
      %s225 = sphi 0, %s223
      %s226 = sphi 0, %s225
      %s240 = sphi 0, %s226
      %s244 = sphi 0, %s244
      %s246 = sphi 0, %s244
      %s247 = sphi 0, %s246
      %s261 = sphi 0, %s247
      %s267 = sphi 0, %s269
      %s270 = sphi 0, %s267
      %s271 = sphi 0, %s270
      %s287 = sphi 0, %s271
    $region4: #{tpu_custom_call.1} parent=1 // loop_header_branch
      %24 = sbr.rel (%p22) target = $region8
    $region5: #{tpu_custom_call.1} parent=1 // loop_body
      %s26 = ssub.s32 %s21, 1
      %s27 = ssub.s32 %s21, 2
      %s28 = sadd.s32 %s21, 1
      %s29 = ssub.s32 %s21, %s28
      %p30 = scmp.eq.s32.totalorder %s29, 0
      %s32 = sadd.s32 %s31, 1
      %s33 = scalar_select %p30, %s31, %s32
      %p36 = pneg %p30
      %p37 = scmp.eq.s32.totalorder %s21, 1
      %p38 = por %p36, %p37
      %p39 = scmp.ne.s32.totalorder %s31, %s34
      %p40 = scmp.eq.s32.totalorder %s21, 0
      %p41 = por %p39, %p40
      %p42 = scmp.ne.s32.totalorder %s31, %s34
      %p43 = scmp.eq.s32.totalorder %s26, 1
      %p44 = por %p42, %p43
      %p45 = scmp.ne.s32.totalorder %s34, %s35
      %p46 = scmp.eq.s32.totalorder %s26, 0
      %p47 = por %p45, %p46
      %p48 = scmp.ne.s32.totalorder %s34, %s35
      %p49 = scmp.eq.s32.totalorder %s27, 1
      %p50 = por %p48, %p49
      %p52 = scmp.ne.s32.totalorder %s35, %s51
      %p53 = scmp.eq.s32.totalorder %s27, 0
      %p54 = por %p52, %p53
      %s56 = sadd.s32 %s55, 1
      %p59 = scmp.eq.s32.totalorder %s21, 1
      %p60 = scmp.ne.s32.totalorder %s55, %s57
      %p61 = scmp.eq.s32.totalorder %s21, 0
      %p62 = por %p60, %p61
      %p63 = scmp.ne.s32.totalorder %s55, %s57
      %p64 = scmp.eq.s32.totalorder %s26, 1
      %p65 = por %p63, %p64
      %p66 = scmp.ne.s32.totalorder %s57, %s58
      %p67 = scmp.eq.s32.totalorder %s26, 0
      %p68 = por %p66, %p67
      %p69 = scmp.ne.s32.totalorder %s57, %s58
      %p70 = scmp.eq.s32.totalorder %s27, 1
      %p71 = por %p69, %p70
      %p73 = scmp.ne.s32.totalorder %s58, %s72
      %p74 = scmp.eq.s32.totalorder %s27, 0
      %p75 = por %p73, %p74
      %s77 = sadd.s32 %s76, 1
      %p80 = scmp.eq.s32.totalorder %s21, 1
      %p81 = scmp.ne.s32.totalorder %s76, %s78
      %p82 = scmp.eq.s32.totalorder %s21, 0
      %p83 = por %p81, %p82
      %p84 = scmp.ne.s32.totalorder %s76, %s78
      %p85 = scmp.eq.s32.totalorder %s26, 1
      %p86 = por %p84, %p85
      %p87 = scmp.ne.s32.totalorder %s78, %s79
      %p88 = scmp.eq.s32.totalorder %s26, 0
      %p89 = por %p87, %p88
      %p90 = scmp.ne.s32.totalorder %s78, %s79
      %p91 = scmp.eq.s32.totalorder %s27, 1
      %p92 = por %p90, %p91
      %p94 = scmp.ne.s32.totalorder %s79, %s93
      %p95 = scmp.eq.s32.totalorder %s27, 0
      %p96 = por %p94, %p95
      %s98 = sadd.s32 %s97, 1
      %p101 = scmp.eq.s32.totalorder %s21, 1
      %p102 = scmp.ne.s32.totalorder %s97, %s99
      %p103 = scmp.eq.s32.totalorder %s21, 0
      %p104 = por %p102, %p103
      %p105 = scmp.ne.s32.totalorder %s97, %s99
      %p106 = scmp.eq.s32.totalorder %s26, 1
      %p107 = por %p105, %p106
      %p108 = scmp.ne.s32.totalorder %s99, %s100
      %p109 = scmp.eq.s32.totalorder %s26, 0
      %p110 = por %p108, %p109
      %p111 = scmp.ne.s32.totalorder %s99, %s100
      %p112 = scmp.eq.s32.totalorder %s27, 1
      %p113 = por %p111, %p112
      %p115 = scmp.ne.s32.totalorder %s100, %s114
      %p116 = scmp.eq.s32.totalorder %s27, 0
      %p117 = por %p115, %p116
      %s119 = sadd.s32 %s118, 1
      %p122 = scmp.eq.s32.totalorder %s21, 1
      %p123 = scmp.ne.s32.totalorder %s118, %s120
      %p124 = scmp.eq.s32.totalorder %s21, 0
      %p125 = por %p123, %p124
      %p126 = scmp.ne.s32.totalorder %s118, %s120
      %p127 = scmp.eq.s32.totalorder %s26, 1
      %p128 = por %p126, %p127
      %p129 = scmp.ne.s32.totalorder %s120, %s121
      %p130 = scmp.eq.s32.totalorder %s26, 0
      %p131 = por %p129, %p130
      %p132 = scmp.ne.s32.totalorder %s120, %s121
      %p133 = scmp.eq.s32.totalorder %s27, 1
      %p134 = por %p132, %p133
      %p136 = scmp.ne.s32.totalorder %s121, %s135
      %p137 = scmp.eq.s32.totalorder %s27, 0
      %p138 = por %p136, %p137
      %s140 = sadd.s32 %s139, 1
      %p143 = scmp.eq.s32.totalorder %s21, 1
      %p144 = scmp.ne.s32.totalorder %s139, %s141
      %p145 = scmp.eq.s32.totalorder %s21, 0
      %p146 = por %p144, %p145
      %p147 = scmp.ne.s32.totalorder %s139, %s141
      %p148 = scmp.eq.s32.totalorder %s26, 1
      %p149 = por %p147, %p148
      %p150 = scmp.ne.s32.totalorder %s141, %s142
      %p151 = scmp.eq.s32.totalorder %s26, 0
      %p152 = por %p150, %p151
      %p153 = scmp.ne.s32.totalorder %s141, %s142
      %p154 = scmp.eq.s32.totalorder %s27, 1
      %p155 = por %p153, %p154
      %p157 = scmp.ne.s32.totalorder %s142, %s156
      %p158 = scmp.eq.s32.totalorder %s27, 0
      %p159 = por %p157, %p158
      %s161 = sadd.s32 %s160, 1
      %p164 = scmp.eq.s32.totalorder %s21, 1
      %p165 = scmp.ne.s32.totalorder %s160, %s162
      %p166 = scmp.eq.s32.totalorder %s21, 0
      %p167 = por %p165, %p166
      %p168 = scmp.ne.s32.totalorder %s160, %s162
      %p169 = scmp.eq.s32.totalorder %s26, 1
      %p170 = por %p168, %p169
      %p171 = scmp.ne.s32.totalorder %s162, %s163
      %p172 = scmp.eq.s32.totalorder %s26, 0
      %p173 = por %p171, %p172
      %p174 = scmp.ne.s32.totalorder %s162, %s163
      %p175 = scmp.eq.s32.totalorder %s27, 1
      %p176 = por %p174, %p175
      %p178 = scmp.ne.s32.totalorder %s163, %s177
      %p179 = scmp.eq.s32.totalorder %s27, 0
      %p180 = por %p178, %p179
      %s182 = sadd.s32 %s181, 1
      %p185 = scmp.eq.s32.totalorder %s21, 1
      %p186 = scmp.ne.s32.totalorder %s181, %s183
      %p187 = scmp.eq.s32.totalorder %s21, 0
      %p188 = por %p186, %p187
      %p189 = scmp.ne.s32.totalorder %s181, %s183
      %p190 = scmp.eq.s32.totalorder %s26, 1
      %p191 = por %p189, %p190
      %p192 = scmp.ne.s32.totalorder %s183, %s184
      %p193 = scmp.eq.s32.totalorder %s26, 0
      %p194 = por %p192, %p193
      %p195 = scmp.ne.s32.totalorder %s183, %s184
      %p196 = scmp.eq.s32.totalorder %s27, 1
      %p197 = por %p195, %p196
      %p199 = scmp.ne.s32.totalorder %s184, %s198
      %p200 = scmp.eq.s32.totalorder %s27, 0
      %p201 = por %p199, %p200
      %s203 = sadd.s32 %s202, 1
      %p206 = scmp.eq.s32.totalorder %s21, 1
      %p207 = scmp.ne.s32.totalorder %s202, %s204
      %p208 = scmp.eq.s32.totalorder %s21, 0
      %p209 = por %p207, %p208
      %p210 = scmp.ne.s32.totalorder %s202, %s204
      %p211 = scmp.eq.s32.totalorder %s26, 1
      %p212 = por %p210, %p211
      %p213 = scmp.ne.s32.totalorder %s204, %s205
      %p214 = scmp.eq.s32.totalorder %s26, 0
      %p215 = por %p213, %p214
      %p216 = scmp.ne.s32.totalorder %s204, %s205
      %p217 = scmp.eq.s32.totalorder %s27, 1
      %p218 = por %p216, %p217
      %p220 = scmp.ne.s32.totalorder %s205, %s219
      %p221 = scmp.eq.s32.totalorder %s27, 0
      %p222 = por %p220, %p221
      %s224 = sadd.s32 %s223, 1
      %p227 = scmp.eq.s32.totalorder %s21, 1
      %p228 = scmp.ne.s32.totalorder %s223, %s225
      %p229 = scmp.eq.s32.totalorder %s21, 0
      %p230 = por %p228, %p229
      %p231 = scmp.ne.s32.totalorder %s223, %s225
      %p232 = scmp.eq.s32.totalorder %s26, 1
      %p233 = por %p231, %p232
      %p234 = scmp.ne.s32.totalorder %s225, %s226
      %p235 = scmp.eq.s32.totalorder %s26, 0
      %p236 = por %p234, %p235
      %p237 = scmp.ne.s32.totalorder %s225, %s226
      %p238 = scmp.eq.s32.totalorder %s27, 1
      %p239 = por %p237, %p238
      %p241 = scmp.ne.s32.totalorder %s226, %s240
      %p242 = scmp.eq.s32.totalorder %s27, 0
      %p243 = por %p241, %p242
      %s245 = sadd.s32 %s244, 1
      %p248 = scmp.eq.s32.totalorder %s21, 1
      %p249 = scmp.ne.s32.totalorder %s244, %s246
      %p250 = scmp.eq.s32.totalorder %s21, 0
      %p251 = por %p249, %p250
      %p252 = scmp.ne.s32.totalorder %s244, %s246
      %p253 = scmp.eq.s32.totalorder %s26, 1
      %p254 = por %p252, %p253
      %p255 = scmp.ne.s32.totalorder %s246, %s247
      %p256 = scmp.eq.s32.totalorder %s26, 0
      %p257 = por %p255, %p256
      %p258 = scmp.ne.s32.totalorder %s246, %s247
      %p259 = scmp.eq.s32.totalorder %s27, 1
      %p260 = por %p258, %p259
      %p262 = scmp.ne.s32.totalorder %s247, %s261
      %p263 = scmp.eq.s32.totalorder %s27, 0
      %p264 = por %p262, %p263
      %s265 = ssub.s32 %s21, %s28
      %p266 = scmp.eq.s32.totalorder %s265, 0
      %s268 = sadd.s32 %s267, 1
      %s269 = scalar_select %p266, %s267, %s268
      %p272 = pneg %p266
      %p273 = scmp.eq.s32.totalorder %s21, 1
      %p274 = por %p272, %p273
      %p275 = scmp.ne.s32.totalorder %s267, %s270
      %p276 = scmp.eq.s32.totalorder %s21, 0
      %p277 = por %p275, %p276
      %p278 = scmp.ne.s32.totalorder %s267, %s270
      %p279 = scmp.eq.s32.totalorder %s26, 1
      %p280 = por %p278, %p279
      %p281 = scmp.ne.s32.totalorder %s270, %s271
      %p282 = scmp.eq.s32.totalorder %s26, 0
      %p283 = por %p281, %p282
      %p284 = scmp.ne.s32.totalorder %s270, %s271
      %p285 = scmp.eq.s32.totalorder %s27, 1
      %p286 = por %p284, %p285
      %p288 = scmp.ne.s32.totalorder %s271, %s287
      %p289 = scmp.eq.s32.totalorder %s27, 0
      %p290 = por %p288, %p289
      %p291 = scmp.le.s32.totalorder 1, %s21
      %p292 = scmp.lt.s32.totalorder %s21, 3
      %p293 = pnand %p291, %p292
      %p294 = pneg %p293
      // Predicated region
      $region9: #{tpu_custom_call.1} parent=5 // pred_check
        _
      $region10: #{tpu_custom_call.1} parent=5 // pred_check_branch
        %296 = sbr.rel (%p293) target = $region12
      $region11: #{tpu_custom_call.1} parent=5 // pred_region
        %s297 = ssub.s32 %s21, 1
        // Predicated region
        $region13: #{tpu_custom_call.1} parent=11 // pred_check
          %p298 = pneg %p68
        $region14: #{tpu_custom_call.1} parent=11 // pred_check_branch
          %300 = sbr.rel (%p298) target = $region16
        $region15: #{tpu_custom_call.1} parent=11 // pred_region
          %s302 = ssub.s32 26112, 26112
          %303 = vsyncadd [#allocation3], %s302
          %s304 = sshll.u32 [#allocation2], 4
          %s305 = int_to_ptr.vmem [resolvable:$true] %s304
          %310 = dma.hbm_to_vmem [thread:$0]  %s1, 26112, %s305, [#allocation3], 384, 384, 24
        $region16: #{tpu_custom_call.1} parent=11 // pred_fallthru
          _
        // Predicated region
        $region17: #{tpu_custom_call.1} parent=11 // pred_check
          %p311 = pneg %p89
        $region18: #{tpu_custom_call.1} parent=11 // pred_check_branch
          %313 = sbr.rel (%p311) target = $region20
        $region19: #{tpu_custom_call.1} parent=11 // pred_region
          _
        $region20: #{tpu_custom_call.1} parent=11 // pred_fallthru
          _
        // Predicated region
        $region21: #{tpu_custom_call.1} parent=11 // pred_check
          %p314 = pneg %p110
        $region22: #{tpu_custom_call.1} parent=11 // pred_check_branch
          %316 = sbr.rel (%p314) target = $region24
        $region23: #{tpu_custom_call.1} parent=11 // pred_region
          _
        $region24: #{tpu_custom_call.1} parent=11 // pred_fallthru
          _
        // Predicated region
        $region25: #{tpu_custom_call.1} parent=11 // pred_check
          %p317 = pneg %p131
        $region26: #{tpu_custom_call.1} parent=11 // pred_check_branch
          %319 = sbr.rel (%p317) target = $region28
        $region27: #{tpu_custom_call.1} parent=11 // pred_region
          _
        $region28: #{tpu_custom_call.1} parent=11 // pred_fallthru
          _
        // Predicated region
        $region29: #{tpu_custom_call.1} parent=11 // pred_check
          %p320 = pneg %p152
        $region30: #{tpu_custom_call.1} parent=11 // pred_check_branch
          %322 = sbr.rel (%p320) target = $region32
        $region31: #{tpu_custom_call.1} parent=11 // pred_region
          _
        $region32: #{tpu_custom_call.1} parent=11 // pred_fallthru
          _
        // Predicated region
        $region33: #{tpu_custom_call.1} parent=11 // pred_check
          %p323 = pneg %p173
        $region34: #{tpu_custom_call.1} parent=11 // pred_check_branch
          %325 = sbr.rel (%p323) target = $region36
        $region35: #{tpu_custom_call.1} parent=11 // pred_region
          _
        $region36: #{tpu_custom_call.1} parent=11 // pred_fallthru
          _
        // Predicated region
        $region37: #{tpu_custom_call.1} parent=11 // pred_check
          %p326 = pneg %p194
        $region38: #{tpu_custom_call.1} parent=11 // pred_check_branch
          %328 = sbr.rel (%p326) target = $region40
        $region39: #{tpu_custom_call.1} parent=11 // pred_region
          _
        $region40: #{tpu_custom_call.1} parent=11 // pred_fallthru
          _
        // Predicated region
        $region41: #{tpu_custom_call.1} parent=11 // pred_check
          %p329 = pneg %p215
        $region42: #{tpu_custom_call.1} parent=11 // pred_check_branch
          %331 = sbr.rel (%p329) target = $region44
        $region43: #{tpu_custom_call.1} parent=11 // pred_region
          _
        $region44: #{tpu_custom_call.1} parent=11 // pred_fallthru
          _
        // Predicated region
        $region45: #{tpu_custom_call.1} parent=11 // pred_check
          %p332 = pneg %p236
        $region46: #{tpu_custom_call.1} parent=11 // pred_check_branch
          %334 = sbr.rel (%p332) target = $region48
        $region47: #{tpu_custom_call.1} parent=11 // pred_region
          _
        $region48: #{tpu_custom_call.1} parent=11 // pred_fallthru
          _
        // Predicated region
        $region49: #{tpu_custom_call.1} parent=11 // pred_check
          %p335 = pneg %p257
        $region50: #{tpu_custom_call.1} parent=11 // pred_check_branch
          %337 = sbr.rel (%p335) target = $region52
        $region51: #{tpu_custom_call.1} parent=11 // pred_region
          _
        $region52: #{tpu_custom_call.1} parent=11 // pred_fallthru
          _
      $region12: #{tpu_custom_call.1} parent=5 // pred_fallthru
        _
      %p338 = scmp.lt.s32.totalorder %s21, 2
      // Predicated region
      $region53: #{tpu_custom_call.1} parent=5 // pred_check
        %p339 = pneg %p338
      $region54: #{tpu_custom_call.1} parent=5 // pred_check_branch
        %341 = sbr.rel (%p339) target = $region56
      $region55: #{tpu_custom_call.1} parent=5 // pred_region
        // Predicated region
        $region57: #{tpu_custom_call.1} parent=55 // pred_check
          %p342 = pneg %p41
        $region58: #{tpu_custom_call.1} parent=55 // pred_check_branch
          %344 = sbr.rel (%p342) target = $region60
        $region59: #{tpu_custom_call.1} parent=55 // pred_region
          %p345 = scmp.lt.s32.totalorder %s21, 1
          %s346 = scalar_select %p345, %s21, 1
          %s347 = smul.addr %s346, 5
          %s348 = smul.addr %s347, 8
          %s349 = scalar_lea.vmem %s0, %s348
        $region60: #{tpu_custom_call.1} parent=55 // pred_fallthru
          _
      $region56: #{tpu_custom_call.1} parent=5 // pred_fallthru
        _
      %p350 = scmp.le.s32.totalorder 1, %s21
      %p351 = scmp.lt.s32.totalorder %s21, 3
      %p352 = pnand %p350, %p351
      %p353 = pneg %p352
      // Predicated region
      $region61: #{tpu_custom_call.1} parent=5 // pred_check
        _
      $region62: #{tpu_custom_call.1} parent=5 // pred_check_branch
        %355 = sbr.rel (%p352) target = $region64
      $region63: #{tpu_custom_call.1} parent=5 // pred_region
        %s356 = ssub.s32 %s21, 1
        // Predicated region
        $region65: #{tpu_custom_call.1} parent=63 // pred_check
          %p357 = pneg %p68
        $region66: #{tpu_custom_call.1} parent=63 // pred_check_branch
          %359 = sbr.rel (%p357) target = $region68
        $region67: #{tpu_custom_call.1} parent=63 // pred_region
          %360 = dma.done [#allocation3], 26112
        $region68: #{tpu_custom_call.1} parent=63 // pred_fallthru
          _
        %p361 = scmp.lt.s32.totalorder %s26, 1
        %s362 = scalar_select %p361, %s26, 1
        %s363 = smul.addr %s362, 5
        %s364 = smul.addr %s363, 8
        %s365 = scalar_lea.vmem %s0, %s364
        %p366 = pneg %p47
        %p367 = pneg %p44
        %p368 = pneg %p68
        %p369 = pneg %p65
        %p370 = pneg %p89
        %p371 = pneg %p86
        %p372 = pneg %p110
        %p373 = pneg %p107
        %p374 = pneg %p131
        %p375 = pneg %p128
        %p376 = pneg %p152
        %p377 = pneg %p149
        %p378 = pneg %p173
        %p379 = pneg %p170
        %p380 = pneg %p194
        %p381 = pneg %p191
        %p382 = pneg %p215
        %p383 = pneg %p212
        %p384 = pneg %p236
        %p385 = pneg %p233
        %p386 = pneg %p257
        %p387 = pneg %p254
        %p388 = pneg %p283
        %p389 = pneg %p280
        %s390 = sand.u32 %s270, 1
        %s391 = scalar_lea.sflag [#allocation4], %s390
        %s392 = sand.u32 %s270, 1
        %s393 = scalar_lea.vmem [#allocation5], %s392
        %p394 = scmp.lt.s32.totalorder %s26, 1
        %s395 = scalar_select %p394, %s26, 1
        %s396 = smul.addr %s395, 5
        %s397 = smul.addr %s396, 8
        %s398 = scalar_lea.vmem %s0, %s397
        %v399 = vld [vmem:[%s398] sm:$0xff]
        %v400 = vld [vmem:[%s398 + $0x8] sm:$0xff]
        %v401 = vld [vmem:[%s398 + $0x10] sm:$0xff]
        %v402 = vld [vmem:[%s398 + $0x18] sm:$0xff]
        %v403 = vld [vmem:[%s398 + $0x20] sm:$0xff]
        %v404 = vld [vmem:[#allocation2] sm:$0xff]
        %v405 = vld [vmem:[#allocation2 + $0x8] sm:$0xff]
        %v406 = vld [vmem:[#allocation2 + $0x10] sm:$0xff]
        %v407 = vld [vmem:[#allocation2 + $0x18] sm:$0xff]
        %v408 = vld [vmem:[#allocation2 + $0x20] sm:$0xff]
        %v409 = vld [vmem:[#allocation2 + $0x28] sm:$0xff]
        %v410 = vld [vmem:[#allocation2 + $0x30] sm:$0xff]
        %v411 = vld [vmem:[#allocation2 + $0x38] sm:$0xff]
        %v412 = vld [vmem:[#allocation2 + $0x40] sm:$0xff]
        %v413 = vld [vmem:[#allocation2 + $0x48] sm:$0xff]
        %v414 = vld [vmem:[#allocation2 + $0x50] sm:$0xff]
        %v415 = vld [vmem:[#allocation2 + $0x58] sm:$0xff]
        %v416 = vld [vmem:[#allocation2 + $0x60] sm:$0xff]
        %v417 = vld [vmem:[#allocation2 + $0x68] sm:$0xff]
        %v418 = vld [vmem:[#allocation2 + $0x70] sm:$0xff]
        %v419 = vld [vmem:[#allocation2 + $0x78] sm:$0xff]
        %v420 = vld [vmem:[#allocation2 + $0x80] sm:$0xff]
        %v421 = vld [vmem:[#allocation2 + $0x88] sm:$0xff]
        %v422 = vld [vmem:[#allocation2 + $0x90] sm:$0xff]
        %v423 = vld [vmem:[#allocation2 + $0x98] sm:$0xff]
        %v424 = vld [vmem:[#allocation2 + $0xa0] sm:$0xff]
        %v425 = vld [vmem:[#allocation2 + $0xa8] sm:$0xff]
        %v426 = vld [vmem:[#allocation2 + $0xb0] sm:$0xff]
        %v427 = vld [vmem:[#allocation2 + $0xb8] sm:$0xff]
        %v428 = vld [vmem:[#allocation2 + $0xc0] sm:$0xff]
        %v429 = vld [vmem:[#allocation2 + $0xc8] sm:$0xff]
        %v430 = vld [vmem:[#allocation2 + $0xd0] sm:$0xff]
        %v431 = vld [vmem:[#allocation2 + $0xd8] sm:$0xff]
        %v432 = vld [vmem:[#allocation2 + $0xe0] sm:$0xff]
        %v433 = vld [vmem:[#allocation2 + $0xe8] sm:$0xff]
        %v434 = vld [vmem:[#allocation2 + $0xf0] sm:$0xff]
        %v435 = vld [vmem:[#allocation2 + $0xf8] sm:$0xff]
        %v436 = vld [vmem:[#allocation2 + $0x100] sm:$0xff]
        %v437 = vld [vmem:[#allocation2 + $0x108] sm:$0xff]
        %v438 = vld [vmem:[#allocation2 + $0x110] sm:$0xff]
        %v439 = vld [vmem:[#allocation2 + $0x118] sm:$0xff]
        %v440 = vld [vmem:[#allocation2 + $0x120] sm:$0xff]
        %v441 = vld [vmem:[#allocation2 + $0x128] sm:$0xff]
        %v442 = vld [vmem:[#allocation2 + $0x130] sm:$0xff]
        %v443 = vld [vmem:[#allocation2 + $0x138] sm:$0xff]
        %v444 = vld [vmem:[#allocation2 + $0x140] sm:$0xff]
        %v445 = vld [vmem:[#allocation2 + $0x148] sm:$0xff]
        %v446 = vld [vmem:[#allocation2 + $0x150] sm:$0xff]
        %v447 = vld [vmem:[#allocation2 + $0x158] sm:$0xff]
        %v448 = vld [vmem:[#allocation2 + $0x160] sm:$0xff]
        %v449 = vld [vmem:[#allocation2 + $0x168] sm:$0xff]
        %v450 = vld [vmem:[#allocation2 + $0x170] sm:$0xff]
        %v451 = vld [vmem:[#allocation2 + $0x178] sm:$0xff]
        %v452 = vld [vmem:[#allocation2 + $0x180] sm:$0xff]
        %v453 = vld [vmem:[#allocation2 + $0x188] sm:$0xff]
        %v454 = vld [vmem:[#allocation2 + $0x190] sm:$0xff]
        %v455 = vld [vmem:[#allocation2 + $0x198] sm:$0xff]
        %v456 = vld [vmem:[#allocation2 + $0x1a0] sm:$0xff]
        %v457 = vld [vmem:[#allocation2 + $0x1a8] sm:$0xff]
        %v458 = vld [vmem:[#allocation2 + $0x1b0] sm:$0xff]
        %v459 = vld [vmem:[#allocation2 + $0x1b8] sm:$0xff]
        %v460 = vld [vmem:[#allocation2 + $0x1c0] sm:$0xff]
        %v461 = vld [vmem:[#allocation2 + $0x1c8] sm:$0xff]
        %v462 = vld [vmem:[#allocation2 + $0x1d0] sm:$0xff]
        %v463 = vld [vmem:[#allocation2 + $0x1d8] sm:$0xff]
        %v464 = vld [vmem:[#allocation2 + $0x1e0] sm:$0xff]
        %v465 = vld [vmem:[#allocation2 + $0x1e8] sm:$0xff]
        %v466 = vld [vmem:[#allocation2 + $0x1f0] sm:$0xff]
        %v467 = vld [vmem:[#allocation2 + $0x1f8] sm:$0xff]
        %v468 = vld [vmem:[#allocation2 + $0x200] sm:$0xff]
        %v469 = vld [vmem:[#allocation2 + $0x208] sm:$0xff]
        %v470 = vld [vmem:[#allocation2 + $0x210] sm:$0xff]
        %v471 = vld [vmem:[#allocation2 + $0x218] sm:$0xff]
        %v472 = vld [vmem:[#allocation2 + $0x220] sm:$0xff]
        %v473 = vld [vmem:[#allocation2 + $0x228] sm:$0xff]
        %v474 = vld [vmem:[#allocation2 + $0x230] sm:$0xff]
        %v475 = vld [vmem:[#allocation2 + $0x238] sm:$0xff]
        %v476 = vld [vmem:[#allocation2 + $0x240] sm:$0xff]
        %v477 = vld [vmem:[#allocation2 + $0x248] sm:$0xff]
        %v478 = vld [vmem:[#allocation2 + $0x250] sm:$0xff]
        %v479 = vld [vmem:[#allocation2 + $0x258] sm:$0xff]
        %v480 = vld [vmem:[#allocation2 + $0x260] sm:$0xff]
        %v481 = vld [vmem:[#allocation2 + $0x268] sm:$0xff]
        %v482 = vld [vmem:[#allocation2 + $0x270] sm:$0xff]
        %v483 = vld [vmem:[#allocation2 + $0x278] sm:$0xff]
        %v484 = vld [vmem:[#allocation2 + $0x280] sm:$0xff]
        %v485 = vld [vmem:[#allocation2 + $0x288] sm:$0xff]
        %v486 = vld [vmem:[#allocation2 + $0x290] sm:$0xff]
        %v487 = vld [vmem:[#allocation2 + $0x298] sm:$0xff]
        %v488 = vld [vmem:[#allocation2 + $0x2a0] sm:$0xff]
        %v489 = vld [vmem:[#allocation2 + $0x2a8] sm:$0xff]
        %v490 = vld [vmem:[#allocation2 + $0x2b0] sm:$0xff]
        %v491 = vld [vmem:[#allocation2 + $0x2b8] sm:$0xff]
        %v492 = vld [vmem:[#allocation2 + $0x2c0] sm:$0xff]
        %v493 = vld [vmem:[#allocation2 + $0x2c8] sm:$0xff]
        %v494 = vld [vmem:[#allocation2 + $0x2d0] sm:$0xff]
        %v495 = vld [vmem:[#allocation2 + $0x2d8] sm:$0xff]
        %v496 = vld [vmem:[#allocation2 + $0x2e0] sm:$0xff]
        %v497 = vld [vmem:[#allocation2 + $0x2e8] sm:$0xff]
        %v498 = vld [vmem:[#allocation2 + $0x2f0] sm:$0xff]
        %v499 = vld [vmem:[#allocation2 + $0x2f8] sm:$0xff]
        %v500 = vld [vmem:[#allocation2 + $0x300] sm:$0xff]
        %v501 = vld [vmem:[#allocation2 + $0x308] sm:$0xff]
        %v502 = vld [vmem:[#allocation2 + $0x310] sm:$0xff]
        %v503 = vld [vmem:[#allocation2 + $0x318] sm:$0xff]
        %v504 = vld [vmem:[#allocation2 + $0x320] sm:$0xff]
        %v505 = vld [vmem:[#allocation2 + $0x328] sm:$0xff]
        %v506 = vld [vmem:[#allocation2 + $0x330] sm:$0xff]
        %v507 = vld [vmem:[#allocation2 + $0x338] sm:$0xff]
        %v508 = vld [vmem:[#allocation2 + $0x340] sm:$0xff]
        %v509 = vld [vmem:[#allocation2 + $0x348] sm:$0xff]
        %v510 = vld [vmem:[#allocation2 + $0x350] sm:$0xff]
        %v511 = vld [vmem:[#allocation2 + $0x358] sm:$0xff]
        %v512 = vld [vmem:[#allocation2 + $0x360] sm:$0xff]
        %v513 = vld [vmem:[#allocation2 + $0x368] sm:$0xff]
        %v514 = vld [vmem:[#allocation2 + $0x370] sm:$0xff]
        %v515 = vld [vmem:[#allocation2 + $0x378] sm:$0xff]
        %v516 = vld [vmem:[#allocation2 + $0x380] sm:$0xff]
        %v517 = vld [vmem:[#allocation2 + $0x388] sm:$0xff]
        %v518 = vld [vmem:[#allocation2 + $0x390] sm:$0xff]
        %v519 = vld [vmem:[#allocation2 + $0x398] sm:$0xff]
        %v520 = vld [vmem:[#allocation2 + $0x3a0] sm:$0xff]
        %v521 = vld [vmem:[#allocation2 + $0x3a8] sm:$0xff]
        %v522 = vld [vmem:[#allocation2 + $0x3b0] sm:$0xff]
        %v523 = vld [vmem:[#allocation2 + $0x3b8] sm:$0xff]
        %v524 = vld [vmem:[#allocation2 + $0x3c0] sm:$0xff]
        %v525 = vld [vmem:[#allocation2 + $0x3c8] sm:$0xff]
        %v526 = vld [vmem:[#allocation2 + $0x3d0] sm:$0xff]
        %v527 = vld [vmem:[#allocation2 + $0x3d8] sm:$0xff]
        %v528 = vld [vmem:[#allocation2 + $0x3e0] sm:$0xff]
        %v529 = vld [vmem:[#allocation2 + $0x3e8] sm:$0xff]
        %v530 = vld [vmem:[#allocation2 + $0x3f0] sm:$0xff]
        %v531 = vld [vmem:[#allocation2 + $0x3f8] sm:$0xff]
        %v532 = vld [vmem:[#allocation2 + $0x400] sm:$0xff]
        %v533 = vld [vmem:[#allocation2 + $0x408] sm:$0xff]
        %v534 = vld [vmem:[#allocation2 + $0x410] sm:$0xff]
        %v535 = vld [vmem:[#allocation2 + $0x418] sm:$0xff]
        %v536 = vld [vmem:[#allocation2 + $0x420] sm:$0xff]
        %v537 = vld [vmem:[#allocation2 + $0x428] sm:$0xff]
        %v538 = vld [vmem:[#allocation2 + $0x430] sm:$0xff]
        %v539 = vld [vmem:[#allocation2 + $0x438] sm:$0xff]
        %v540 = vld [vmem:[#allocation2 + $0x440] sm:$0xff]
        %v541 = vld [vmem:[#allocation2 + $0x448] sm:$0xff]
        %v542 = vld [vmem:[#allocation2 + $0x450] sm:$0xff]
        %v543 = vld [vmem:[#allocation2 + $0x458] sm:$0xff]
        %v544 = vld [vmem:[#allocation2 + $0x460] sm:$0xff]
        %v545 = vld [vmem:[#allocation2 + $0x468] sm:$0xff]
        %v546 = vld [vmem:[#allocation2 + $0x470] sm:$0xff]
        %v547 = vld [vmem:[#allocation2 + $0x478] sm:$0xff]
        %v548 = vld [vmem:[#allocation2 + $0x480] sm:$0xff]
        %v549 = vld [vmem:[#allocation2 + $0x488] sm:$0xff]
        %v550 = vld [vmem:[#allocation2 + $0x490] sm:$0xff]
        %v551 = vld [vmem:[#allocation2 + $0x498] sm:$0xff]
        %v552 = vld [vmem:[#allocation2 + $0x4a0] sm:$0xff]
        %v553 = vld [vmem:[#allocation2 + $0x4a8] sm:$0xff]
        %v554 = vld [vmem:[#allocation2 + $0x4b0] sm:$0xff]
        %v555 = vld [vmem:[#allocation2 + $0x4b8] sm:$0xff]
        %v556 = vld [vmem:[#allocation2 + $0x4c0] sm:$0xff]
        %v557 = vld [vmem:[#allocation2 + $0x4c8] sm:$0xff]
        %v558 = vld [vmem:[#allocation2 + $0x4d0] sm:$0xff]
        %v559 = vld [vmem:[#allocation2 + $0x4d8] sm:$0xff]
        %v560 = vld [vmem:[#allocation2 + $0x4e0] sm:$0xff]
        %v561 = vld [vmem:[#allocation2 + $0x4e8] sm:$0xff]
        %v562 = vld [vmem:[#allocation2 + $0x4f0] sm:$0xff]
        %v563 = vld [vmem:[#allocation2 + $0x4f8] sm:$0xff]
        %v564 = vld [vmem:[#allocation2 + $0x500] sm:$0xff]
        %v565 = vld [vmem:[#allocation2 + $0x508] sm:$0xff]
        %v566 = vld [vmem:[#allocation2 + $0x510] sm:$0xff]
        %v567 = vld [vmem:[#allocation2 + $0x518] sm:$0xff]
        %v568 = vld [vmem:[#allocation2 + $0x520] sm:$0xff]
        %v569 = vld [vmem:[#allocation2 + $0x528] sm:$0xff]
        %v570 = vld [vmem:[#allocation2 + $0x530] sm:$0xff]
        %v571 = vld [vmem:[#allocation2 + $0x538] sm:$0xff]
        %v572 = vld [vmem:[#allocation2 + $0x540] sm:$0xff]
        %v573 = vld [vmem:[#allocation2 + $0x548] sm:$0xff]
        %v574 = vld [vmem:[#allocation2 + $0x550] sm:$0xff]
        %v575 = vld [vmem:[#allocation2 + $0x558] sm:$0xff]
        %v576 = vld [vmem:[#allocation2 + $0x560] sm:$0xff]
        %v577 = vld [vmem:[#allocation2 + $0x568] sm:$0xff]
        %v578 = vld [vmem:[#allocation2 + $0x570] sm:$0xff]
        %v579 = vld [vmem:[#allocation2 + $0x578] sm:$0xff]
        %v580 = vld [vmem:[#allocation2 + $0x580] sm:$0xff]
        %v581 = vld [vmem:[#allocation2 + $0x588] sm:$0xff]
        %v582 = vld [vmem:[#allocation2 + $0x590] sm:$0xff]
        %v583 = vld [vmem:[#allocation2 + $0x598] sm:$0xff]
        %v584 = vld [vmem:[#allocation2 + $0x5a0] sm:$0xff]
        %v585 = vld [vmem:[#allocation2 + $0x5a8] sm:$0xff]
        %v586 = vld [vmem:[#allocation2 + $0x5b0] sm:$0xff]
        %v587 = vld [vmem:[#allocation2 + $0x5b8] sm:$0xff]
        %v588 = vld [vmem:[#allocation2 + $0x5c0] sm:$0xff]
        %v589 = vld [vmem:[#allocation2 + $0x5c8] sm:$0xff]
        %v590 = vld [vmem:[#allocation2 + $0x5d0] sm:$0xff]
        %v591 = vld [vmem:[#allocation2 + $0x5d8] sm:$0xff]
        %v592 = vld [vmem:[#allocation2 + $0x5e0] sm:$0xff]
        %v593 = vld [vmem:[#allocation2 + $0x5e8] sm:$0xff]
        %v594 = vld [vmem:[#allocation2 + $0x5f0] sm:$0xff]
        %v595 = vld [vmem:[#allocation2 + $0x5f8] sm:$0xff]
        %v596 = vld [vmem:[#allocation2 + $0x600] sm:$0xff]
        %v597 = vld [vmem:[#allocation2 + $0x608] sm:$0xff]
        %v598 = vld [vmem:[#allocation2 + $0x610] sm:$0xff]
        %v599 = vld [vmem:[#allocation2 + $0x618] sm:$0xff]
        %v600 = vld [vmem:[#allocation2 + $0x620] sm:$0xff]
        %v601 = vld [vmem:[#allocation2 + $0x628] sm:$0xff]
        %v602 = vld [vmem:[#allocation2 + $0x630] sm:$0xff]
        %v603 = vld [vmem:[#allocation2 + $0x638] sm:$0xff]
        %v604 = vld [vmem:[#allocation2 + $0x640] sm:$0xff]
        %v605 = vld [vmem:[#allocation2 + $0x648] sm:$0x1]
        %v606 = vld [vmem:[#allocation2 + $0x650] sm:$0x1]
        %v607 = vld [vmem:[#allocation2 + $0x658] sm:$0x1]
        %v608 = vld [vmem:[%s2] sm:$0x7]
        %v610 = vlaneseq
        %v611 = vshrl.u32 %v610, 7
        %v612 = vsub.s32 0, %v611
        %v613 = vrot.slane %v608, %v612
        %v614 = vlaneseq
        %v615 = vshrl.u32 %v614, 7
        %v616 = vsub.s32 1, %v615
        %v617 = vrot.slane %v608, %v616
        %v618 = vlaneseq
        %v619 = vshrl.u32 %v618, 7
        %v620 = vsub.s32 2, %v619
        %v621 = vrot.slane %v608, %v620
        %vm625 = vcmask 203776
        %v627 = vsel %vm625, %v403, 0
        %vm629 = vcmask 1040384
        %v631 = vsel %vm629, %v605, 0
        %v634 = vsel %vm629, %v606, 0
        %v637 = vsel %vm629, %v607, 0
        %639 = vmatprep.subr.mxu0 %v405
        %640 = vmatpush1.msra.mxu0 %v404
        %641 = vmatprep.subr.mxu0 %v408
        %642 = vmatpush1.msra.mxu0 %v407
        %643 = vmatprep.subr.mxu0 %v411
        %644 = vmatpush1.msra.mxu0 %v410
        %645 = vmatprep.subr.mxu0 %v414
        %646 = vmatpush1.msra.mxu0 %v413
        %647 = vmatprep.subr.mxu0 %v417
        %648 = vmatpush1.msra.mxu0 %v416
        %649 = vmatprep.subr.mxu0 %v420
        %650 = vmatpush1.msra.mxu0 %v419
        %651 = vmatprep.subr.mxu0 %v423
        %652 = vmatpush1.msra.mxu0 %v422
        %653 = vmatprep.subr.mxu0 %v426
        %654 = vmatpush1.msra.mxu0 %v425
        %655 = vmatprep.subr.mxu0 %v429
        %656 = vmatpush1.msra.mxu0 %v428
        %657 = vmatprep.subr.mxu0 %v432
        %658 = vmatpush1.msra.mxu0 %v431
        %659 = vmatprep.subr.mxu0 %v435
        %660 = vmatpush1.msra.mxu0 %v434
        %661 = vmatprep.subr.mxu0 %v438
        %662 = vmatpush1.msra.mxu0 %v437
        %663 = vmatprep.subr.mxu0 %v441
        %664 = vmatpush1.msra.mxu0 %v440
        %665 = vmatprep.subr.mxu0 %v444
        %666 = vmatpush1.msra.mxu0 %v443
        %667 = vmatprep.subr.mxu0 %v447
        %668 = vmatpush1.msra.mxu0 %v446
        %669 = vmatprep.subr.mxu0 %v450
        %670 = vmatpush1.msra.mxu0 %v449
        %671 = vmatprep.subr.mxu0 %v453
        %672 = vmatpush1.msra.mxu0 %v452
        %673 = vmatprep.subr.mxu0 %v456
        %674 = vmatpush1.msra.mxu0 %v455
        %675 = vmatprep.subr.mxu0 %v459
        %676 = vmatpush1.msra.mxu0 %v458
        %677 = vmatprep.subr.mxu0 %v462
        %678 = vmatpush1.msra.mxu0 %v461
        %679 = vmatprep.subr.mxu0 %v465
        %680 = vmatpush1.msra.mxu0 %v464
        %681 = vmatprep.subr.mxu0 %v468
        %682 = vmatpush1.msra.mxu0 %v467
        %683 = vmatprep.subr.mxu0 %v471
        %684 = vmatpush1.msra.mxu0 %v470
        %685 = vmatprep.subr.mxu0 %v474
        %686 = vmatpush1.msra.mxu0 %v473
        %687 = vmatprep.subr.mxu0 %v477
        %688 = vmatpush1.msra.mxu0 %v476
        %689 = vmatprep.subr.mxu0 %v480
        %690 = vmatpush1.msra.mxu0 %v479
        %691 = vmatprep.subr.mxu0 %v483
        %692 = vmatpush1.msra.mxu0 %v482
        %693 = vmatprep.subr.mxu0 %v486
        %694 = vmatpush1.msra.mxu0 %v485
        %695 = vmatprep.subr.mxu0 %v489
        %696 = vmatpush1.msra.mxu0 %v488
        %697 = vmatprep.subr.mxu0 %v492
        %698 = vmatpush1.msra.mxu0 %v491
        %699 = vmatprep.subr.mxu0 %v495
        %700 = vmatpush1.msra.mxu0 %v494
        %701 = vmatprep.subr.mxu0 %v498
        %702 = vmatpush1.msra.mxu0 %v497
        %703 = vmatprep.mubr.f32.mxu0 %v400
        %704 = vmatmul.mubr.f32.gmra.mrb[0].mxu0 %v399
        %v705 = vpop.f32.mrb[0].mxu0
        %v706 = vadd.f32 %v613, %v705
        %v707 = vpop.f32.mrb[0].mxu0
        %v708 = vadd.f32 %v617, %v707
        %709 = vdwg.mxu0
        %710 = vmatprep.subr.mxu0 %v501
        %711 = vmatpush1.msra.mxu0 %v500
        %712 = vmatprep.subr.mxu0 %v504
        %713 = vmatpush1.msra.mxu0 %v503
        %714 = vmatprep.subr.mxu0 %v507
        %715 = vmatpush1.msra.mxu0 %v506
        %716 = vmatprep.subr.mxu0 %v510
        %717 = vmatpush1.msra.mxu0 %v509
        %718 = vmatprep.subr.mxu0 %v513
        %719 = vmatpush1.msra.mxu0 %v512
        %720 = vmatprep.subr.mxu0 %v516
        %721 = vmatpush1.msra.mxu0 %v515
        %722 = vmatprep.subr.mxu0 %v519
        %723 = vmatpush1.msra.mxu0 %v518
        %724 = vmatprep.subr.mxu0 %v522
        %725 = vmatpush1.msra.mxu0 %v521
        %726 = vmatprep.subr.mxu0 %v525
        %727 = vmatpush1.msra.mxu0 %v524
        %728 = vmatprep.subr.mxu0 %v528
        %729 = vmatpush1.msra.mxu0 %v527
        %730 = vmatprep.subr.mxu0 %v531
        %731 = vmatpush1.msra.mxu0 %v530
        %732 = vmatprep.subr.mxu0 %v534
        %733 = vmatpush1.msra.mxu0 %v533
        %734 = vmatprep.subr.mxu0 %v537
        %735 = vmatpush1.msra.mxu0 %v536
        %736 = vmatprep.subr.mxu0 %v540
        %737 = vmatpush1.msra.mxu0 %v539
        %738 = vmatprep.subr.mxu0 %v543
        %739 = vmatpush1.msra.mxu0 %v542
        %740 = vmatprep.subr.mxu0 %v546
        %741 = vmatpush1.msra.mxu0 %v545
        %742 = vmatprep.subr.mxu0 %v549
        %743 = vmatpush1.msra.mxu0 %v548
        %744 = vmatprep.subr.mxu0 %v552
        %745 = vmatpush1.msra.mxu0 %v551
        %746 = vmatprep.subr.mxu0 %v555
        %747 = vmatpush1.msra.mxu0 %v554
        %748 = vmatprep.subr.mxu0 %v558
        %749 = vmatpush1.msra.mxu0 %v557
        %750 = vmatprep.subr.mxu0 %v561
        %751 = vmatpush1.msra.mxu0 %v560
        %752 = vmatprep.subr.mxu0 %v564
        %753 = vmatpush1.msra.mxu0 %v563
        %754 = vmatprep.subr.mxu0 %v567
        %755 = vmatpush1.msra.mxu0 %v566
        %756 = vmatprep.subr.mxu0 %v570
        %757 = vmatpush1.msra.mxu0 %v569
        %758 = vmatprep.subr.mxu0 %v573
        %759 = vmatpush1.msra.mxu0 %v572
        %760 = vmatprep.subr.mxu0 %v576
        %761 = vmatpush1.msra.mxu0 %v575
        %762 = vmatprep.subr.mxu0 %v579
        %763 = vmatpush1.msra.mxu0 %v578
        %764 = vmatprep.subr.mxu0 %v582
        %765 = vmatpush1.msra.mxu0 %v581
        %766 = vmatprep.subr.mxu0 %v585
        %767 = vmatpush1.msra.mxu0 %v584
        %768 = vmatprep.subr.mxu0 %v588
        %769 = vmatpush1.msra.mxu0 %v587
        %770 = vmatprep.subr.mxu0 %v591
        %771 = vmatpush1.msra.mxu0 %v590
        %772 = vmatprep.subr.mxu0 %v594
        %773 = vmatpush1.msra.mxu0 %v593
        %774 = vmatprep.mubr.f32.mxu0 %v402
        %775 = vmatmul.mubr.f32.gmra.mrb[0].mxu0 %v401
        %v776 = vpop.f32.mrb[0].mxu0
        %v777 = vadd.f32 %v706, %v776
        %v778 = vpop.f32.mrb[0].mxu0
        %v779 = vadd.f32 %v708, %v778
        %780 = vdwg.mxu0
        %781 = vmatprep.subr.mxu0 %v597
        %782 = vmatpush1.msra.mxu0 %v596
        %783 = vmatprep.subr.mxu0 %v600
        %784 = vmatpush1.msra.mxu0 %v599
        %785 = vmatprep.subr.mxu0 %v603
        %786 = vmatpush1.msra.mxu0 %v602
        %787 = vmatprep.subr.mxu0 %v634
        %788 = vmatpush1.msra.mxu0 %v631
        %789 = vmatprep.subr.mxu0 0.0
        %790 = vmatpush1.msra.mxu0 0.0
        %791 = vmatprep.subr.mxu0 0.0
        %792 = vmatpush1.msra.mxu0 0.0
        %793 = vmatprep.subr.mxu0 0.0
        %794 = vmatpush1.msra.mxu0 0.0
        %795 = vmatprep.subr.mxu0 0.0
        %796 = vmatpush1.msra.mxu0 0.0
        %797 = vmatprep.subr.mxu0 0.0
        %798 = vmatpush1.msra.mxu0 0.0
        %799 = vmatprep.subr.mxu0 0.0
        %800 = vmatpush1.msra.mxu0 0.0
        %801 = vmatprep.subr.mxu0 0.0
        %802 = vmatpush1.msra.mxu0 0.0
        %803 = vmatprep.subr.mxu0 0.0
        %804 = vmatpush1.msra.mxu0 0.0
        %805 = vmatprep.subr.mxu0 0.0
        %806 = vmatpush1.msra.mxu0 0.0
        %807 = vmatprep.subr.mxu0 0.0
        %808 = vmatpush1.msra.mxu0 0.0
        %809 = vmatprep.subr.mxu0 0.0
        %810 = vmatpush1.msra.mxu0 0.0
        %811 = vmatprep.subr.mxu0 0.0
        %812 = vmatpush1.msra.mxu0 0.0
        %813 = vmatprep.subr.mxu0 0.0
        %814 = vmatpush1.msra.mxu0 0.0
        %815 = vmatprep.subr.mxu0 0.0
        %816 = vmatpush1.msra.mxu0 0.0
        %817 = vmatprep.subr.mxu0 0.0
        %818 = vmatpush1.msra.mxu0 0.0
        %819 = vmatprep.subr.mxu0 0.0
        %820 = vmatpush1.msra.mxu0 0.0
        %821 = vmatprep.subr.mxu0 0.0
        %822 = vmatpush1.msra.mxu0 0.0
        %823 = vmatprep.subr.mxu0 0.0
        %824 = vmatpush1.msra.mxu0 0.0
        %825 = vmatprep.subr.mxu0 0.0
        %826 = vmatpush1.msra.mxu0 0.0
        %827 = vmatprep.subr.mxu0 0.0
        %828 = vmatpush1.msra.mxu0 0.0
        %829 = vmatprep.subr.mxu0 0.0
        %830 = vmatpush1.msra.mxu0 0.0
        %831 = vmatprep.subr.mxu0 0.0
        %832 = vmatpush1.msra.mxu0 0.0
        %833 = vmatprep.subr.mxu0 0.0
        %834 = vmatpush1.msra.mxu0 0.0
        %835 = vmatprep.subr.mxu0 0.0
        %836 = vmatpush1.msra.mxu0 0.0
        %837 = vmatprep.subr.mxu0 0.0
        %838 = vmatpush1.msra.mxu0 0.0
        %839 = vmatprep.subr.mxu0 0.0
        %840 = vmatpush1.msra.mxu0 0.0
        %841 = vmatprep.subr.mxu0 0.0
        %842 = vmatpush1.msra.mxu0 0.0
        %843 = vmatprep.subr.mxu0 0.0
        %844 = vmatpush1.msra.mxu0 0.0
        %845 = vmatprep.mubr.f32.mxu0 0.0
        %846 = vmatmul.mubr.f32.gmra.mrb[0].mxu0 %v627
        %v847 = vpop.f32.mrb[0].mxu0
        %v848 = vadd.f32 %v777, %v847
        %v849 = vpop.f32.mrb[0].mxu0
        %v850 = vadd.f32 %v779, %v849
        %851 = vdwg.mxu0
        %852 = vmatprep.subr.mxu0 0.0
        %853 = vmatpush1.msra.mxu0 %v406
        %854 = vmatprep.subr.mxu0 0.0
        %855 = vmatpush1.msra.mxu0 %v409
        %856 = vmatprep.subr.mxu0 0.0
        %857 = vmatpush1.msra.mxu0 %v412
        %858 = vmatprep.subr.mxu0 0.0
        %859 = vmatpush1.msra.mxu0 %v415
        %860 = vmatprep.subr.mxu0 0.0
        %861 = vmatpush1.msra.mxu0 %v418
        %862 = vmatprep.subr.mxu0 0.0
        %863 = vmatpush1.msra.mxu0 %v421
        %864 = vmatprep.subr.mxu0 0.0
        %865 = vmatpush1.msra.mxu0 %v424
        %866 = vmatprep.subr.mxu0 0.0
        %867 = vmatpush1.msra.mxu0 %v427
        %868 = vmatprep.subr.mxu0 0.0
        %869 = vmatpush1.msra.mxu0 %v430
        %870 = vmatprep.subr.mxu0 0.0
        %871 = vmatpush1.msra.mxu0 %v433
        %872 = vmatprep.subr.mxu0 0.0
        %873 = vmatpush1.msra.mxu0 %v436
        %874 = vmatprep.subr.mxu0 0.0
        %875 = vmatpush1.msra.mxu0 %v439
        %876 = vmatprep.subr.mxu0 0.0
        %877 = vmatpush1.msra.mxu0 %v442
        %878 = vmatprep.subr.mxu0 0.0
        %879 = vmatpush1.msra.mxu0 %v445
        %880 = vmatprep.subr.mxu0 0.0
        %881 = vmatpush1.msra.mxu0 %v448
        %882 = vmatprep.subr.mxu0 0.0
        %883 = vmatpush1.msra.mxu0 %v451
        %884 = vmatprep.subr.mxu0 0.0
        %885 = vmatpush1.msra.mxu0 %v454
        %886 = vmatprep.subr.mxu0 0.0
        %887 = vmatpush1.msra.mxu0 %v457
        %888 = vmatprep.subr.mxu0 0.0
        %889 = vmatpush1.msra.mxu0 %v460
        %890 = vmatprep.subr.mxu0 0.0
        %891 = vmatpush1.msra.mxu0 %v463
        %892 = vmatprep.subr.mxu0 0.0
        %893 = vmatpush1.msra.mxu0 %v466
        %894 = vmatprep.subr.mxu0 0.0
        %895 = vmatpush1.msra.mxu0 %v469
        %896 = vmatprep.subr.mxu0 0.0
        %897 = vmatpush1.msra.mxu0 %v472
        %898 = vmatprep.subr.mxu0 0.0
        %899 = vmatpush1.msra.mxu0 %v475
        %900 = vmatprep.subr.mxu0 0.0
        %901 = vmatpush1.msra.mxu0 %v478
        %902 = vmatprep.subr.mxu0 0.0
        %903 = vmatpush1.msra.mxu0 %v481
        %904 = vmatprep.subr.mxu0 0.0
        %905 = vmatpush1.msra.mxu0 %v484
        %906 = vmatprep.subr.mxu0 0.0
        %907 = vmatpush1.msra.mxu0 %v487
        %908 = vmatprep.subr.mxu0 0.0
        %909 = vmatpush1.msra.mxu0 %v490
        %910 = vmatprep.subr.mxu0 0.0
        %911 = vmatpush1.msra.mxu0 %v493
        %912 = vmatprep.subr.mxu0 0.0
        %913 = vmatpush1.msra.mxu0 %v496
        %914 = vmatprep.subr.mxu0 0.0
        %915 = vmatpush1.msra.mxu0 %v499
        %916 = vmatprep.mubr.f32.mxu0 %v400
        %917 = vmatmul.mubr.f32.gmra.mrb[0].mxu0 %v399
        %v918 = vpop.f32.mrb[0].mxu0
        %v919 = vadd.f32 %v621, %v918
        %v920 = vpop.f32.mrb[0].mxu0
        %921 = vdwg.mxu0
        %922 = vmatprep.subr.mxu0 0.0
        %923 = vmatpush1.msra.mxu0 %v502
        %924 = vmatprep.subr.mxu0 0.0
        %925 = vmatpush1.msra.mxu0 %v505
        %926 = vmatprep.subr.mxu0 0.0
        %927 = vmatpush1.msra.mxu0 %v508
        %928 = vmatprep.subr.mxu0 0.0
        %929 = vmatpush1.msra.mxu0 %v511
        %930 = vmatprep.subr.mxu0 0.0
        %931 = vmatpush1.msra.mxu0 %v514
        %932 = vmatprep.subr.mxu0 0.0
        %933 = vmatpush1.msra.mxu0 %v517
        %934 = vmatprep.subr.mxu0 0.0
        %935 = vmatpush1.msra.mxu0 %v520
        %936 = vmatprep.subr.mxu0 0.0
        %937 = vmatpush1.msra.mxu0 %v523
        %938 = vmatprep.subr.mxu0 0.0
        %939 = vmatpush1.msra.mxu0 %v526
        %940 = vmatprep.subr.mxu0 0.0
        %941 = vmatpush1.msra.mxu0 %v529
        %942 = vmatprep.subr.mxu0 0.0
        %943 = vmatpush1.msra.mxu0 %v532
        %944 = vmatprep.subr.mxu0 0.0
        %945 = vmatpush1.msra.mxu0 %v535
        %946 = vmatprep.subr.mxu0 0.0
        %947 = vmatpush1.msra.mxu0 %v538
        %948 = vmatprep.subr.mxu0 0.0
        %949 = vmatpush1.msra.mxu0 %v541
        %950 = vmatprep.subr.mxu0 0.0
        %951 = vmatpush1.msra.mxu0 %v544
        %952 = vmatprep.subr.mxu0 0.0
        %953 = vmatpush1.msra.mxu0 %v547
        %954 = vmatprep.subr.mxu0 0.0
        %955 = vmatpush1.msra.mxu0 %v550
        %956 = vmatprep.subr.mxu0 0.0
        %957 = vmatpush1.msra.mxu0 %v553
        %958 = vmatprep.subr.mxu0 0.0
        %959 = vmatpush1.msra.mxu0 %v556
        %960 = vmatprep.subr.mxu0 0.0
        %961 = vmatpush1.msra.mxu0 %v559
        %962 = vmatprep.subr.mxu0 0.0
        %963 = vmatpush1.msra.mxu0 %v562
        %964 = vmatprep.subr.mxu0 0.0
        %965 = vmatpush1.msra.mxu0 %v565
        %966 = vmatprep.subr.mxu0 0.0
        %967 = vmatpush1.msra.mxu0 %v568
        %968 = vmatprep.subr.mxu0 0.0
        %969 = vmatpush1.msra.mxu0 %v571
        %970 = vmatprep.subr.mxu0 0.0
        %971 = vmatpush1.msra.mxu0 %v574
        %972 = vmatprep.subr.mxu0 0.0
        %973 = vmatpush1.msra.mxu0 %v577
        %974 = vmatprep.subr.mxu0 0.0
        %975 = vmatpush1.msra.mxu0 %v580
        %976 = vmatprep.subr.mxu0 0.0
        %977 = vmatpush1.msra.mxu0 %v583
        %978 = vmatprep.subr.mxu0 0.0
        %979 = vmatpush1.msra.mxu0 %v586
        %980 = vmatprep.subr.mxu0 0.0
        %981 = vmatpush1.msra.mxu0 %v589
        %982 = vmatprep.subr.mxu0 0.0
        %983 = vmatpush1.msra.mxu0 %v592
        %984 = vmatprep.subr.mxu0 0.0
        %985 = vmatpush1.msra.mxu0 %v595
        %986 = vmatprep.mubr.f32.mxu0 %v402
        %987 = vmatmul.mubr.f32.gmra.mrb[0].mxu0 %v401
        %v988 = vpop.f32.mrb[0].mxu0
        %v989 = vadd.f32 %v919, %v988
        %v990 = vpop.f32.mrb[0].mxu0
        %991 = vdwg.mxu0
        %992 = vmatprep.subr.mxu0 0.0
        %993 = vmatpush1.msra.mxu0 %v598
        %994 = vmatprep.subr.mxu0 0.0
        %995 = vmatpush1.msra.mxu0 %v601
        %996 = vmatprep.subr.mxu0 0.0
        %997 = vmatpush1.msra.mxu0 %v604
        %998 = vmatprep.subr.mxu0 0.0
        %999 = vmatpush1.msra.mxu0 %v637
        %1000 = vmatprep.subr.mxu0 0.0
        %1001 = vmatpush1.msra.mxu0 0.0
        %1002 = vmatprep.subr.mxu0 0.0
        %1003 = vmatpush1.msra.mxu0 0.0
        %1004 = vmatprep.subr.mxu0 0.0
        %1005 = vmatpush1.msra.mxu0 0.0
        %1006 = vmatprep.subr.mxu0 0.0
        %1007 = vmatpush1.msra.mxu0 0.0
        %1008 = vmatprep.subr.mxu0 0.0
        %1009 = vmatpush1.msra.mxu0 0.0
        %1010 = vmatprep.subr.mxu0 0.0
        %1011 = vmatpush1.msra.mxu0 0.0
        %1012 = vmatprep.subr.mxu0 0.0
        %1013 = vmatpush1.msra.mxu0 0.0
        %1014 = vmatprep.subr.mxu0 0.0
        %1015 = vmatpush1.msra.mxu0 0.0
        %1016 = vmatprep.subr.mxu0 0.0
        %1017 = vmatpush1.msra.mxu0 0.0
        %1018 = vmatprep.subr.mxu0 0.0
        %1019 = vmatpush1.msra.mxu0 0.0
        %1020 = vmatprep.subr.mxu0 0.0
        %1021 = vmatpush1.msra.mxu0 0.0
        %1022 = vmatprep.subr.mxu0 0.0
        %1023 = vmatpush1.msra.mxu0 0.0
        %1024 = vmatprep.subr.mxu0 0.0
        %1025 = vmatpush1.msra.mxu0 0.0
        %1026 = vmatprep.subr.mxu0 0.0
        %1027 = vmatpush1.msra.mxu0 0.0
        %1028 = vmatprep.subr.mxu0 0.0
        %1029 = vmatpush1.msra.mxu0 0.0
        %1030 = vmatprep.subr.mxu0 0.0
        %1031 = vmatpush1.msra.mxu0 0.0
        %1032 = vmatprep.subr.mxu0 0.0
        %1033 = vmatpush1.msra.mxu0 0.0
        %1034 = vmatprep.subr.mxu0 0.0
        %1035 = vmatpush1.msra.mxu0 0.0
        %1036 = vmatprep.subr.mxu0 0.0
        %1037 = vmatpush1.msra.mxu0 0.0
        %1038 = vmatprep.subr.mxu0 0.0
        %1039 = vmatpush1.msra.mxu0 0.0
        %1040 = vmatprep.subr.mxu0 0.0
        %1041 = vmatpush1.msra.mxu0 0.0
        %1042 = vmatprep.subr.mxu0 0.0
        %1043 = vmatpush1.msra.mxu0 0.0
        %1044 = vmatprep.subr.mxu0 0.0
        %1045 = vmatpush1.msra.mxu0 0.0
        %1046 = vmatprep.subr.mxu0 0.0
        %1047 = vmatpush1.msra.mxu0 0.0
        %1048 = vmatprep.subr.mxu0 0.0
        %1049 = vmatpush1.msra.mxu0 0.0
        %1050 = vmatprep.subr.mxu0 0.0
        %1051 = vmatpush1.msra.mxu0 0.0
        %1052 = vmatprep.subr.mxu0 0.0
        %1053 = vmatpush1.msra.mxu0 0.0
        %1054 = vmatprep.subr.mxu0 0.0
        %1055 = vmatpush1.msra.mxu0 0.0
        %1056 = vmatprep.mubr.f32.mxu0 0.0
        %1057 = vmatmul.mubr.f32.gmra.mrb[0].mxu0 %v627
        %v1058 = vpop.f32.mrb[0].mxu0
        %v1059 = vadd.f32 %v989, %v1058
        %v1060 = vpop.f32.mrb[0].mxu0
        %1061 = vdwg.mxu0
        %v1062 = vmax.f32 %v848, 0.0
        %v1063 = vmax.f32 %v850, 0.0
        %v1064 = vmax.f32 %v1059, 0.0
        %v1065 = vld [vmem:[%s3] sm:$0xff]
        %v1066 = vld [vmem:[%s3 + $0x8] sm:$0xff]
        %v1067 = vld [vmem:[%s3 + $0x10] sm:$0xff]
        %v1068 = vld [vmem:[%s3 + $0x18] sm:$0xff]
        %v1069 = vld [vmem:[%s3 + $0x20] sm:$0xff]
        %v1070 = vld [vmem:[%s3 + $0x28] sm:$0xff]
        %v1071 = vld [vmem:[%s3 + $0x30] sm:$0xff]
        %v1072 = vld [vmem:[%s3 + $0x38] sm:$0xff]
        %v1073 = vld [vmem:[%s3 + $0x40] sm:$0xff]
        %v1074 = vld [vmem:[%s3 + $0x48] sm:$0xff]
        %v1075 = vld [vmem:[%s3 + $0x50] sm:$0xff]
        %v1076 = vld [vmem:[%s3 + $0x58] sm:$0xff]
        %v1077 = vld [vmem:[%s3 + $0x60] sm:$0xff]
        %v1078 = vld [vmem:[%s3 + $0x68] sm:$0xff]
        %v1079 = vld [vmem:[%s3 + $0x70] sm:$0xff]
        %v1080 = vld [vmem:[%s3 + $0x78] sm:$0xff]
        %v1081 = vld [vmem:[%s3 + $0x80] sm:$0xff]
        %v1082 = vld [vmem:[%s3 + $0x88] sm:$0xff]
        %v1083 = vld [vmem:[%s3 + $0x90] sm:$0xff]
        %v1084 = vld [vmem:[%s3 + $0x98] sm:$0xff]
        %v1085 = vld [vmem:[%s3 + $0xa0] sm:$0xff]
        %v1086 = vld [vmem:[%s3 + $0xa8] sm:$0xff]
        %v1087 = vld [vmem:[%s3 + $0xb0] sm:$0xff]
        %v1088 = vld [vmem:[%s3 + $0xb8] sm:$0xff]
        %v1089 = vld [vmem:[%s3 + $0xc0] sm:$0xff]
        %v1090 = vld [vmem:[%s3 + $0xc8] sm:$0xff]
        %v1091 = vld [vmem:[%s3 + $0xd0] sm:$0xff]
        %v1092 = vld [vmem:[%s3 + $0xd8] sm:$0xff]
        %v1093 = vld [vmem:[%s3 + $0xe0] sm:$0xff]
        %v1094 = vld [vmem:[%s3 + $0xe8] sm:$0xff]
        %v1095 = vld [vmem:[%s3 + $0xf0] sm:$0xff]
        %v1096 = vld [vmem:[%s3 + $0xf8] sm:$0xff]
        %v1097 = vld [vmem:[%s3 + $0x100] sm:$0xff]
        %v1098 = vld [vmem:[%s3 + $0x108] sm:$0xff]
        %v1099 = vld [vmem:[%s3 + $0x110] sm:$0xff]
        %v1100 = vld [vmem:[%s3 + $0x118] sm:$0xff]
        %v1101 = vld [vmem:[%s3 + $0x120] sm:$0xff]
        %v1102 = vld [vmem:[%s3 + $0x128] sm:$0xff]
        %v1103 = vld [vmem:[%s3 + $0x130] sm:$0xff]
        %v1104 = vld [vmem:[%s3 + $0x138] sm:$0xff]
        %v1105 = vld [vmem:[%s3 + $0x140] sm:$0xff]
        %v1106 = vld [vmem:[%s3 + $0x148] sm:$0xff]
        %v1107 = vld [vmem:[%s3 + $0x150] sm:$0xff]
        %v1108 = vld [vmem:[%s3 + $0x158] sm:$0xff]
        %v1109 = vld [vmem:[%s3 + $0x160] sm:$0xf]
        %v1110 = vld [vmem:[%s4] sm:$0x1]
        %v1112 = vlaneseq
        %v1113 = vshrl.u32 %v1112, 7
        %v1114 = vsub.s32 0, %v1113
        %v1115 = vrot.slane %v1110, %v1114
        %vm1117 = vcmask 818176
        %v1119 = vsel %vm1117, %v1064, 0
        %vm1121 = vcmask 1043456
        %v1123 = vsel %vm1121, %v1109, 0
        %1125 = vmatprep.subr.mxu0 0.0
        %1126 = vmatpush1.msra.mxu0 %v1065
        %1127 = vmatprep.subr.mxu0 0.0
        %1128 = vmatpush1.msra.mxu0 %v1066
        %1129 = vmatprep.subr.mxu0 0.0
        %1130 = vmatpush1.msra.mxu0 %v1067
        %1131 = vmatprep.subr.mxu0 0.0
        %1132 = vmatpush1.msra.mxu0 %v1068
        %1133 = vmatprep.subr.mxu0 0.0
        %1134 = vmatpush1.msra.mxu0 %v1069
        %1135 = vmatprep.subr.mxu0 0.0
        %1136 = vmatpush1.msra.mxu0 %v1070
        %1137 = vmatprep.subr.mxu0 0.0
        %1138 = vmatpush1.msra.mxu0 %v1071
        %1139 = vmatprep.subr.mxu0 0.0
        %1140 = vmatpush1.msra.mxu0 %v1072
        %1141 = vmatprep.subr.mxu0 0.0
        %1142 = vmatpush1.msra.mxu0 %v1073
        %1143 = vmatprep.subr.mxu0 0.0
        %1144 = vmatpush1.msra.mxu0 %v1074
        %1145 = vmatprep.subr.mxu0 0.0
        %1146 = vmatpush1.msra.mxu0 %v1075
        %1147 = vmatprep.subr.mxu0 0.0
        %1148 = vmatpush1.msra.mxu0 %v1076
        %1149 = vmatprep.subr.mxu0 0.0
        %1150 = vmatpush1.msra.mxu0 %v1077
        %1151 = vmatprep.subr.mxu0 0.0
        %1152 = vmatpush1.msra.mxu0 %v1078
        %1153 = vmatprep.subr.mxu0 0.0
        %1154 = vmatpush1.msra.mxu0 %v1079
        %1155 = vmatprep.subr.mxu0 0.0
        %1156 = vmatpush1.msra.mxu0 %v1080
        %1157 = vmatprep.subr.mxu0 0.0
        %1158 = vmatpush1.msra.mxu0 %v1081
        %1159 = vmatprep.subr.mxu0 0.0
        %1160 = vmatpush1.msra.mxu0 %v1082
        %1161 = vmatprep.subr.mxu0 0.0
        %1162 = vmatpush1.msra.mxu0 %v1083
        %1163 = vmatprep.subr.mxu0 0.0
        %1164 = vmatpush1.msra.mxu0 %v1084
        %1165 = vmatprep.subr.mxu0 0.0
        %1166 = vmatpush1.msra.mxu0 %v1085
        %1167 = vmatprep.subr.mxu0 0.0
        %1168 = vmatpush1.msra.mxu0 %v1086
        %1169 = vmatprep.subr.mxu0 0.0
        %1170 = vmatpush1.msra.mxu0 %v1087
        %1171 = vmatprep.subr.mxu0 0.0
        %1172 = vmatpush1.msra.mxu0 %v1088
        %1173 = vmatprep.subr.mxu0 0.0
        %1174 = vmatpush1.msra.mxu0 %v1089
        %1175 = vmatprep.subr.mxu0 0.0
        %1176 = vmatpush1.msra.mxu0 %v1090
        %1177 = vmatprep.subr.mxu0 0.0
        %1178 = vmatpush1.msra.mxu0 %v1091
        %1179 = vmatprep.subr.mxu0 0.0
        %1180 = vmatpush1.msra.mxu0 %v1092
        %1181 = vmatprep.subr.mxu0 0.0
        %1182 = vmatpush1.msra.mxu0 %v1093
        %1183 = vmatprep.subr.mxu0 0.0
        %1184 = vmatpush1.msra.mxu0 %v1094
        %1185 = vmatprep.subr.mxu0 0.0
        %1186 = vmatpush1.msra.mxu0 %v1095
        %1187 = vmatprep.subr.mxu0 0.0
        %1188 = vmatpush1.msra.mxu0 %v1096
        %1189 = vmatprep.mubr.f32.mxu0 %v1063
        %1190 = vmatmul.mubr.f32.gmra.mrb[0].mxu0 %v1062
        %v1191 = vpop.f32.mrb[0].mxu0
        %v1192 = vadd.f32 %v1115, %v1191
        %v1193 = vpop.f32.mrb[0].mxu0
        %1194 = vdwg.mxu0
        %1195 = vmatprep.subr.mxu0 0.0
        %1196 = vmatpush1.msra.mxu0 %v1097
        %1197 = vmatprep.subr.mxu0 0.0
        %1198 = vmatpush1.msra.mxu0 %v1098
        %1199 = vmatprep.subr.mxu0 0.0
        %1200 = vmatpush1.msra.mxu0 %v1099
        %1201 = vmatprep.subr.mxu0 0.0
        %1202 = vmatpush1.msra.mxu0 %v1100
        %1203 = vmatprep.subr.mxu0 0.0
        %1204 = vmatpush1.msra.mxu0 %v1101
        %1205 = vmatprep.subr.mxu0 0.0
        %1206 = vmatpush1.msra.mxu0 %v1102
        %1207 = vmatprep.subr.mxu0 0.0
        %1208 = vmatpush1.msra.mxu0 %v1103
        %1209 = vmatprep.subr.mxu0 0.0
        %1210 = vmatpush1.msra.mxu0 %v1104
        %1211 = vmatprep.subr.mxu0 0.0
        %1212 = vmatpush1.msra.mxu0 %v1105
        %1213 = vmatprep.subr.mxu0 0.0
        %1214 = vmatpush1.msra.mxu0 %v1106
        %1215 = vmatprep.subr.mxu0 0.0
        %1216 = vmatpush1.msra.mxu0 %v1107
        %1217 = vmatprep.subr.mxu0 0.0
        %1218 = vmatpush1.msra.mxu0 %v1108
        %1219 = vmatprep.subr.mxu0 0.0
        %1220 = vmatpush1.msra.mxu0 %v1123
        %1221 = vmatprep.subr.mxu0 0.0
        %1222 = vmatpush1.msra.mxu0 0.0
        %1223 = vmatprep.subr.mxu0 0.0
        %1224 = vmatpush1.msra.mxu0 0.0
        %1225 = vmatprep.subr.mxu0 0.0
        %1226 = vmatpush1.msra.mxu0 0.0
        %1227 = vmatprep.subr.mxu0 0.0
        %1228 = vmatpush1.msra.mxu0 0.0
        %1229 = vmatprep.subr.mxu0 0.0
        %1230 = vmatpush1.msra.mxu0 0.0
        %1231 = vmatprep.subr.mxu0 0.0
        %1232 = vmatpush1.msra.mxu0 0.0
        %1233 = vmatprep.subr.mxu0 0.0
        %1234 = vmatpush1.msra.mxu0 0.0
        %1235 = vmatprep.subr.mxu0 0.0
        %1236 = vmatpush1.msra.mxu0 0.0
        %1237 = vmatprep.subr.mxu0 0.0
        %1238 = vmatpush1.msra.mxu0 0.0
        %1239 = vmatprep.subr.mxu0 0.0
        %1240 = vmatpush1.msra.mxu0 0.0
        %1241 = vmatprep.subr.mxu0 0.0
        %1242 = vmatpush1.msra.mxu0 0.0
        %1243 = vmatprep.subr.mxu0 0.0
        %1244 = vmatpush1.msra.mxu0 0.0
        %1245 = vmatprep.subr.mxu0 0.0
        %1246 = vmatpush1.msra.mxu0 0.0
        %1247 = vmatprep.subr.mxu0 0.0
        %1248 = vmatpush1.msra.mxu0 0.0
        %1249 = vmatprep.subr.mxu0 0.0
        %1250 = vmatpush1.msra.mxu0 0.0
        %1251 = vmatprep.subr.mxu0 0.0
        %1252 = vmatpush1.msra.mxu0 0.0
        %1253 = vmatprep.subr.mxu0 0.0
        %1254 = vmatpush1.msra.mxu0 0.0
        %1255 = vmatprep.subr.mxu0 0.0
        %1256 = vmatpush1.msra.mxu0 0.0
        %1257 = vmatprep.subr.mxu0 0.0
        %1258 = vmatpush1.msra.mxu0 0.0
        %1259 = vmatprep.mubr.f32.mxu0 0.0
        %1260 = vmatmul.mubr.f32.gmra.mrb[0].mxu0 %v1119
        %v1261 = vpop.f32.mrb[0].mxu0
        %v1262 = vadd.f32 %v1192, %v1261
        %v1263 = vpop.f32.mrb[0].mxu0
        %1264 = vdwg.mxu0
        %v1265 = vmax.f32 %v1262, 0.0
        %v1266 = vld [vmem:[%s5] sm:$0xff]
        %v1267 = vld [vmem:[%s5 + $0x8] sm:$0xff]
        %v1268 = vld [vmem:[%s5 + $0x10] sm:$0xff]
        %v1269 = vld [vmem:[%s5 + $0x18] sm:$0xff]
        %v1270 = vld [vmem:[%s5 + $0x20] sm:$0xff]
        %v1271 = vld [vmem:[%s5 + $0x28] sm:$0xff]
        %v1272 = vld [vmem:[%s5 + $0x30] sm:$0xff]
        %v1273 = vld [vmem:[%s5 + $0x38] sm:$0xff]
        %v1274 = vld [vmem:[%s5 + $0x40] sm:$0xff]
        %v1275 = vld [vmem:[%s6] sm:$0x1]
        %v1277 = vlaneseq
        %v1278 = vshrl.u32 %v1277, 7
        %v1279 = vsub.s32 0, %v1278
        %v1280 = vrot.slane %v1275, %v1279
        %vm1282 = vcmask 588800
        %v1284 = vsel %vm1282, %v1265, 0
        %1286 = vmatprep.subr.mxu0 0.0
        %1287 = vmatpush1.msra.mxu0 %v1266
        %1288 = vmatprep.subr.mxu0 0.0
        %1289 = vmatpush1.msra.mxu0 %v1267
        %1290 = vmatprep.subr.mxu0 0.0
        %1291 = vmatpush1.msra.mxu0 %v1268
        %1292 = vmatprep.subr.mxu0 0.0
        %1293 = vmatpush1.msra.mxu0 %v1269
        %1294 = vmatprep.subr.mxu0 0.0
        %1295 = vmatpush1.msra.mxu0 %v1270
        %1296 = vmatprep.subr.mxu0 0.0
        %1297 = vmatpush1.msra.mxu0 %v1271
        %1298 = vmatprep.subr.mxu0 0.0
        %1299 = vmatpush1.msra.mxu0 %v1272
        %1300 = vmatprep.subr.mxu0 0.0
        %1301 = vmatpush1.msra.mxu0 %v1273
        %1302 = vmatprep.subr.mxu0 0.0
        %1303 = vmatpush1.msra.mxu0 %v1274
        %1304 = vmatprep.subr.mxu0 0.0
        %1305 = vmatpush1.msra.mxu0 0.0
        %1306 = vmatprep.subr.mxu0 0.0
        %1307 = vmatpush1.msra.mxu0 0.0
        %1308 = vmatprep.subr.mxu0 0.0
        %1309 = vmatpush1.msra.mxu0 0.0
        %1310 = vmatprep.subr.mxu0 0.0
        %1311 = vmatpush1.msra.mxu0 0.0
        %1312 = vmatprep.subr.mxu0 0.0
        %1313 = vmatpush1.msra.mxu0 0.0
        %1314 = vmatprep.subr.mxu0 0.0
        %1315 = vmatpush1.msra.mxu0 0.0
        %1316 = vmatprep.subr.mxu0 0.0
        %1317 = vmatpush1.msra.mxu0 0.0
        %1318 = vmatprep.subr.mxu0 0.0
        %1319 = vmatpush1.msra.mxu0 0.0
        %1320 = vmatprep.subr.mxu0 0.0
        %1321 = vmatpush1.msra.mxu0 0.0
        %1322 = vmatprep.subr.mxu0 0.0
        %1323 = vmatpush1.msra.mxu0 0.0
        %1324 = vmatprep.subr.mxu0 0.0
        %1325 = vmatpush1.msra.mxu0 0.0
        %1326 = vmatprep.subr.mxu0 0.0
        %1327 = vmatpush1.msra.mxu0 0.0
        %1328 = vmatprep.subr.mxu0 0.0
        %1329 = vmatpush1.msra.mxu0 0.0
        %1330 = vmatprep.subr.mxu0 0.0
        %1331 = vmatpush1.msra.mxu0 0.0
        %1332 = vmatprep.subr.mxu0 0.0
        %1333 = vmatpush1.msra.mxu0 0.0
        %1334 = vmatprep.subr.mxu0 0.0
        %1335 = vmatpush1.msra.mxu0 0.0
        %1336 = vmatprep.subr.mxu0 0.0
        %1337 = vmatpush1.msra.mxu0 0.0
        %1338 = vmatprep.subr.mxu0 0.0
        %1339 = vmatpush1.msra.mxu0 0.0
        %1340 = vmatprep.subr.mxu0 0.0
        %1341 = vmatpush1.msra.mxu0 0.0
        %1342 = vmatprep.subr.mxu0 0.0
        %1343 = vmatpush1.msra.mxu0 0.0
        %1344 = vmatprep.subr.mxu0 0.0
        %1345 = vmatpush1.msra.mxu0 0.0
        %1346 = vmatprep.subr.mxu0 0.0
        %1347 = vmatpush1.msra.mxu0 0.0
        %1348 = vmatprep.subr.mxu0 0.0
        %1349 = vmatpush1.msra.mxu0 0.0
        %1350 = vmatprep.mubr.f32.mxu0 0.0
        %1351 = vmatmul.mubr.f32.gmra.mrb[0].mxu0 %v1284
        %v1352 = vpop.f32.mrb[0].mxu0
        %v1353 = vadd.f32 %v1280, %v1352
        %v1354 = vpop.f32.mrb[0].mxu0
        %1355 = vdwg.mxu0
        %v1356 = vmax.f32 %v1353, 0.0
        %v1357 = vld [vmem:[%s7] sm:$0xff]
        %v1358 = vld [vmem:[%s7 + $0x8] sm:$0xff]
        %v1359 = vld [vmem:[%s7 + $0x10] sm:$0xff]
        %v1360 = vld [vmem:[%s7 + $0x18] sm:$0xff]
        %v1361 = vld [vmem:[%s7 + $0x20] sm:$0xff]
        %v1362 = vld [vmem:[%s7 + $0x28] sm:$0xff]
        %v1363 = vld [vmem:[%s7 + $0x30] sm:$0xff]
        %v1364 = vld [vmem:[%s7 + $0x38] sm:$0xff]
        %v1365 = vld [vmem:[%s7 + $0x40] sm:$0xff]
        %v1366 = vld [vmem:[%s7 + $0x48] sm:$0xff]
        %v1367 = vld [vmem:[%s7 + $0x50] sm:$0xff]
        %v1368 = vld [vmem:[%s7 + $0x58] sm:$0xff]
        %v1369 = vld [vmem:[%s7 + $0x60] sm:$0xff]
        %v1370 = vld [vmem:[%s7 + $0x68] sm:$0xff]
        %v1371 = vld [vmem:[%s7 + $0x70] sm:$0xff]
        %v1372 = vld [vmem:[%s7 + $0x78] sm:$0xff]
        %v1373 = vld [vmem:[%s7 + $0x80] sm:$0xff]
        %v1374 = vld [vmem:[%s7 + $0x88] sm:$0xff]
        %v1375 = vld [vmem:[%s7 + $0x90] sm:$0xff]
        %v1376 = vld [vmem:[%s7 + $0x98] sm:$0xff]
        %v1377 = vld [vmem:[%s7 + $0xa0] sm:$0xff]
        %v1378 = vld [vmem:[%s7 + $0xa8] sm:$0xff]
        %v1379 = vld [vmem:[%s7 + $0xb0] sm:$0xff]
        %v1380 = vld [vmem:[%s7 + $0xb8] sm:$0xff]
        %v1381 = vld [vmem:[%s8] sm:$0x1]
        %vm1382 = vcmask 195584
        %v1384 = vsel %vm1382, %v1356, 0
        %1386 = vmatprep.subr.mxu0 0.0
        %1387 = vmatpush1.msra.mxu0 %v1357
        %1388 = vmatprep.subr.mxu0 0.0
        %1389 = vmatpush1.msra.mxu0 %v1358
        %1390 = vmatprep.subr.mxu0 0.0
        %1391 = vmatpush1.msra.mxu0 %v1359
        %1392 = vmatprep.subr.mxu0 0.0
        %1393 = vmatpush1.msra.mxu0 0.0
        %1394 = vmatprep.subr.mxu0 0.0
        %1395 = vmatpush1.msra.mxu0 0.0
        %1396 = vmatprep.subr.mxu0 0.0
        %1397 = vmatpush1.msra.mxu0 0.0
        %1398 = vmatprep.subr.mxu0 0.0
        %1399 = vmatpush1.msra.mxu0 0.0
        %1400 = vmatprep.subr.mxu0 0.0
        %1401 = vmatpush1.msra.mxu0 0.0
        %1402 = vmatprep.subr.mxu0 0.0
        %1403 = vmatpush1.msra.mxu0 0.0
        %1404 = vmatprep.subr.mxu0 0.0
        %1405 = vmatpush1.msra.mxu0 0.0
        %1406 = vmatprep.subr.mxu0 0.0
        %1407 = vmatpush1.msra.mxu0 0.0
        %1408 = vmatprep.subr.mxu0 0.0
        %1409 = vmatpush1.msra.mxu0 0.0
        %1410 = vmatprep.subr.mxu0 0.0
        %1411 = vmatpush1.msra.mxu0 0.0
        %1412 = vmatprep.subr.mxu0 0.0
        %1413 = vmatpush1.msra.mxu0 0.0
        %1414 = vmatprep.subr.mxu0 0.0
        %1415 = vmatpush1.msra.mxu0 0.0
        %1416 = vmatprep.subr.mxu0 0.0
        %1417 = vmatpush1.msra.mxu0 0.0
        %1418 = vmatprep.subr.mxu0 0.0
        %1419 = vmatpush1.msra.mxu0 0.0
        %1420 = vmatprep.subr.mxu0 0.0
        %1421 = vmatpush1.msra.mxu0 0.0
        %1422 = vmatprep.subr.mxu0 0.0
        %1423 = vmatpush1.msra.mxu0 0.0
        %1424 = vmatprep.subr.mxu0 0.0
        %1425 = vmatpush1.msra.mxu0 0.0
        %1426 = vmatprep.subr.mxu0 0.0
        %1427 = vmatpush1.msra.mxu0 0.0
        %1428 = vmatprep.subr.mxu0 0.0
        %1429 = vmatpush1.msra.mxu0 0.0
        %1430 = vmatprep.subr.mxu0 0.0
        %1431 = vmatpush1.msra.mxu0 0.0
        %1432 = vmatprep.subr.mxu0 0.0
        %1433 = vmatpush1.msra.mxu0 0.0
        %1434 = vmatprep.subr.mxu0 0.0
        %1435 = vmatpush1.msra.mxu0 0.0
        %1436 = vmatprep.subr.mxu0 0.0
        %1437 = vmatpush1.msra.mxu0 0.0
        %1438 = vmatprep.subr.mxu0 0.0
        %1439 = vmatpush1.msra.mxu0 0.0
        %1440 = vmatprep.subr.mxu0 0.0
        %1441 = vmatpush1.msra.mxu0 0.0
        %1442 = vmatprep.subr.mxu0 0.0
        %1443 = vmatpush1.msra.mxu0 0.0
        %1444 = vmatprep.subr.mxu0 0.0
        %1445 = vmatpush1.msra.mxu0 0.0
        %1446 = vmatprep.subr.mxu0 0.0
        %1447 = vmatpush1.msra.mxu0 0.0
        %1448 = vmatprep.subr.mxu0 0.0
        %1449 = vmatpush1.msra.mxu0 0.0
        %1450 = vmatprep.mubr.f32.mxu0 0.0
        %1451 = vmatmul.mubr.f32.gmra.mrb[0].mxu0 %v1384
        %v1452 = vpop.f32.mrb[0].mxu0
        %v1453 = vadd.f32 0.0, %v1452
        %v1454 = vpop.f32.mrb[0].mxu0
        %1455 = vdwg.mxu0
        %v1456 = vadd.f32 %v1381, %v1453
        %v1457 = vrot.slane %v1356, 1
        %v1458 = vsel %vm1382, %v1457, 0
        %1460 = vmatprep.subr.mxu0 0.0
        %1461 = vmatpush1.msra.mxu0 %v1360
        %1462 = vmatprep.subr.mxu0 0.0
        %1463 = vmatpush1.msra.mxu0 %v1361
        %1464 = vmatprep.subr.mxu0 0.0
        %1465 = vmatpush1.msra.mxu0 %v1362
        %1466 = vmatprep.subr.mxu0 0.0
        %1467 = vmatpush1.msra.mxu0 0.0
        %1468 = vmatprep.subr.mxu0 0.0
        %1469 = vmatpush1.msra.mxu0 0.0
        %1470 = vmatprep.subr.mxu0 0.0
        %1471 = vmatpush1.msra.mxu0 0.0
        %1472 = vmatprep.subr.mxu0 0.0
        %1473 = vmatpush1.msra.mxu0 0.0
        %1474 = vmatprep.subr.mxu0 0.0
        %1475 = vmatpush1.msra.mxu0 0.0
        %1476 = vmatprep.subr.mxu0 0.0
        %1477 = vmatpush1.msra.mxu0 0.0
        %1478 = vmatprep.subr.mxu0 0.0
        %1479 = vmatpush1.msra.mxu0 0.0
        %1480 = vmatprep.subr.mxu0 0.0
        %1481 = vmatpush1.msra.mxu0 0.0
        %1482 = vmatprep.subr.mxu0 0.0
        %1483 = vmatpush1.msra.mxu0 0.0
        %1484 = vmatprep.subr.mxu0 0.0
        %1485 = vmatpush1.msra.mxu0 0.0
        %1486 = vmatprep.subr.mxu0 0.0
        %1487 = vmatpush1.msra.mxu0 0.0
        %1488 = vmatprep.subr.mxu0 0.0
        %1489 = vmatpush1.msra.mxu0 0.0
        %1490 = vmatprep.subr.mxu0 0.0
        %1491 = vmatpush1.msra.mxu0 0.0
        %1492 = vmatprep.subr.mxu0 0.0
        %1493 = vmatpush1.msra.mxu0 0.0
        %1494 = vmatprep.subr.mxu0 0.0
        %1495 = vmatpush1.msra.mxu0 0.0
        %1496 = vmatprep.subr.mxu0 0.0
        %1497 = vmatpush1.msra.mxu0 0.0
        %1498 = vmatprep.subr.mxu0 0.0
        %1499 = vmatpush1.msra.mxu0 0.0
        %1500 = vmatprep.subr.mxu0 0.0
        %1501 = vmatpush1.msra.mxu0 0.0
        %1502 = vmatprep.subr.mxu0 0.0
        %1503 = vmatpush1.msra.mxu0 0.0
        %1504 = vmatprep.subr.mxu0 0.0
        %1505 = vmatpush1.msra.mxu0 0.0
        %1506 = vmatprep.subr.mxu0 0.0
        %1507 = vmatpush1.msra.mxu0 0.0
        %1508 = vmatprep.subr.mxu0 0.0
        %1509 = vmatpush1.msra.mxu0 0.0
        %1510 = vmatprep.subr.mxu0 0.0
        %1511 = vmatpush1.msra.mxu0 0.0
        %1512 = vmatprep.subr.mxu0 0.0
        %1513 = vmatpush1.msra.mxu0 0.0
        %1514 = vmatprep.subr.mxu0 0.0
        %1515 = vmatpush1.msra.mxu0 0.0
        %1516 = vmatprep.subr.mxu0 0.0
        %1517 = vmatpush1.msra.mxu0 0.0
        %1518 = vmatprep.subr.mxu0 0.0
        %1519 = vmatpush1.msra.mxu0 0.0
        %1520 = vmatprep.subr.mxu0 0.0
        %1521 = vmatpush1.msra.mxu0 0.0
        %1522 = vmatprep.subr.mxu0 0.0
        %1523 = vmatpush1.msra.mxu0 0.0
        %1524 = vmatprep.mubr.f32.mxu0 0.0
        %1525 = vmatmul.mubr.f32.gmra.mrb[0].mxu0 %v1458
        %v1526 = vpop.f32.mrb[0].mxu0
        %v1527 = vadd.f32 0.0, %v1526
        %v1528 = vpop.f32.mrb[0].mxu0
        %1529 = vdwg.mxu0
        %v1530 = vadd.f32 %v1456, %v1527
        %v1531 = vrot.slane %v1356, 2
        %v1532 = vsel %vm1382, %v1531, 0
        %1534 = vmatprep.subr.mxu0 0.0
        %1535 = vmatpush1.msra.mxu0 %v1363
        %1536 = vmatprep.subr.mxu0 0.0
        %1537 = vmatpush1.msra.mxu0 %v1364
        %1538 = vmatprep.subr.mxu0 0.0
        %1539 = vmatpush1.msra.mxu0 %v1365
        %1540 = vmatprep.subr.mxu0 0.0
        %1541 = vmatpush1.msra.mxu0 0.0
        %1542 = vmatprep.subr.mxu0 0.0
        %1543 = vmatpush1.msra.mxu0 0.0
        %1544 = vmatprep.subr.mxu0 0.0
        %1545 = vmatpush1.msra.mxu0 0.0
        %1546 = vmatprep.subr.mxu0 0.0
        %1547 = vmatpush1.msra.mxu0 0.0
        %1548 = vmatprep.subr.mxu0 0.0
        %1549 = vmatpush1.msra.mxu0 0.0
        %1550 = vmatprep.subr.mxu0 0.0
        %1551 = vmatpush1.msra.mxu0 0.0
        %1552 = vmatprep.subr.mxu0 0.0
        %1553 = vmatpush1.msra.mxu0 0.0
        %1554 = vmatprep.subr.mxu0 0.0
        %1555 = vmatpush1.msra.mxu0 0.0
        %1556 = vmatprep.subr.mxu0 0.0
        %1557 = vmatpush1.msra.mxu0 0.0
        %1558 = vmatprep.subr.mxu0 0.0
        %1559 = vmatpush1.msra.mxu0 0.0
        %1560 = vmatprep.subr.mxu0 0.0
        %1561 = vmatpush1.msra.mxu0 0.0
        %1562 = vmatprep.subr.mxu0 0.0
        %1563 = vmatpush1.msra.mxu0 0.0
        %1564 = vmatprep.subr.mxu0 0.0
        %1565 = vmatpush1.msra.mxu0 0.0
        %1566 = vmatprep.subr.mxu0 0.0
        %1567 = vmatpush1.msra.mxu0 0.0
        %1568 = vmatprep.subr.mxu0 0.0
        %1569 = vmatpush1.msra.mxu0 0.0
        %1570 = vmatprep.subr.mxu0 0.0
        %1571 = vmatpush1.msra.mxu0 0.0
        %1572 = vmatprep.subr.mxu0 0.0
        %1573 = vmatpush1.msra.mxu0 0.0
        %1574 = vmatprep.subr.mxu0 0.0
        %1575 = vmatpush1.msra.mxu0 0.0
        %1576 = vmatprep.subr.mxu0 0.0
        %1577 = vmatpush1.msra.mxu0 0.0
        %1578 = vmatprep.subr.mxu0 0.0
        %1579 = vmatpush1.msra.mxu0 0.0
        %1580 = vmatprep.subr.mxu0 0.0
        %1581 = vmatpush1.msra.mxu0 0.0
        %1582 = vmatprep.subr.mxu0 0.0
        %1583 = vmatpush1.msra.mxu0 0.0
        %1584 = vmatprep.subr.mxu0 0.0
        %1585 = vmatpush1.msra.mxu0 0.0
        %1586 = vmatprep.subr.mxu0 0.0
        %1587 = vmatpush1.msra.mxu0 0.0
        %1588 = vmatprep.subr.mxu0 0.0
        %1589 = vmatpush1.msra.mxu0 0.0
        %1590 = vmatprep.subr.mxu0 0.0
        %1591 = vmatpush1.msra.mxu0 0.0
        %1592 = vmatprep.subr.mxu0 0.0
        %1593 = vmatpush1.msra.mxu0 0.0
        %1594 = vmatprep.subr.mxu0 0.0
        %1595 = vmatpush1.msra.mxu0 0.0
        %1596 = vmatprep.subr.mxu0 0.0
        %1597 = vmatpush1.msra.mxu0 0.0
        %1598 = vmatprep.mubr.f32.mxu0 0.0
        %1599 = vmatmul.mubr.f32.gmra.mrb[0].mxu0 %v1532
        %v1600 = vpop.f32.mrb[0].mxu0
        %v1601 = vadd.f32 0.0, %v1600
        %v1602 = vpop.f32.mrb[0].mxu0
        %1603 = vdwg.mxu0
        %v1604 = vadd.f32 %v1530, %v1601
        %v1605 = vrot.slane %v1356, 3
        %v1606 = vsel %vm1382, %v1605, 0
        %1608 = vmatprep.subr.mxu0 0.0
        %1609 = vmatpush1.msra.mxu0 %v1366
        %1610 = vmatprep.subr.mxu0 0.0
        %1611 = vmatpush1.msra.mxu0 %v1367
        %1612 = vmatprep.subr.mxu0 0.0
        %1613 = vmatpush1.msra.mxu0 %v1368
        %1614 = vmatprep.subr.mxu0 0.0
        %1615 = vmatpush1.msra.mxu0 0.0
        %1616 = vmatprep.subr.mxu0 0.0
        %1617 = vmatpush1.msra.mxu0 0.0
        %1618 = vmatprep.subr.mxu0 0.0
        %1619 = vmatpush1.msra.mxu0 0.0
        %1620 = vmatprep.subr.mxu0 0.0
        %1621 = vmatpush1.msra.mxu0 0.0
        %1622 = vmatprep.subr.mxu0 0.0
        %1623 = vmatpush1.msra.mxu0 0.0
        %1624 = vmatprep.subr.mxu0 0.0
        %1625 = vmatpush1.msra.mxu0 0.0
        %1626 = vmatprep.subr.mxu0 0.0
        %1627 = vmatpush1.msra.mxu0 0.0
        %1628 = vmatprep.subr.mxu0 0.0
        %1629 = vmatpush1.msra.mxu0 0.0
        %1630 = vmatprep.subr.mxu0 0.0
        %1631 = vmatpush1.msra.mxu0 0.0
        %1632 = vmatprep.subr.mxu0 0.0
        %1633 = vmatpush1.msra.mxu0 0.0
        %1634 = vmatprep.subr.mxu0 0.0
        %1635 = vmatpush1.msra.mxu0 0.0
        %1636 = vmatprep.subr.mxu0 0.0
        %1637 = vmatpush1.msra.mxu0 0.0
        %1638 = vmatprep.subr.mxu0 0.0
        %1639 = vmatpush1.msra.mxu0 0.0
        %1640 = vmatprep.subr.mxu0 0.0
        %1641 = vmatpush1.msra.mxu0 0.0
        %1642 = vmatprep.subr.mxu0 0.0
        %1643 = vmatpush1.msra.mxu0 0.0
        %1644 = vmatprep.subr.mxu0 0.0
        %1645 = vmatpush1.msra.mxu0 0.0
        %1646 = vmatprep.subr.mxu0 0.0
        %1647 = vmatpush1.msra.mxu0 0.0
        %1648 = vmatprep.subr.mxu0 0.0
        %1649 = vmatpush1.msra.mxu0 0.0
        %1650 = vmatprep.subr.mxu0 0.0
        %1651 = vmatpush1.msra.mxu0 0.0
        %1652 = vmatprep.subr.mxu0 0.0
        %1653 = vmatpush1.msra.mxu0 0.0
        %1654 = vmatprep.subr.mxu0 0.0
        %1655 = vmatpush1.msra.mxu0 0.0
        %1656 = vmatprep.subr.mxu0 0.0
        %1657 = vmatpush1.msra.mxu0 0.0
        %1658 = vmatprep.subr.mxu0 0.0
        %1659 = vmatpush1.msra.mxu0 0.0
        %1660 = vmatprep.subr.mxu0 0.0
        %1661 = vmatpush1.msra.mxu0 0.0
        %1662 = vmatprep.subr.mxu0 0.0
        %1663 = vmatpush1.msra.mxu0 0.0
        %1664 = vmatprep.subr.mxu0 0.0
        %1665 = vmatpush1.msra.mxu0 0.0
        %1666 = vmatprep.subr.mxu0 0.0
        %1667 = vmatpush1.msra.mxu0 0.0
        %1668 = vmatprep.subr.mxu0 0.0
        %1669 = vmatpush1.msra.mxu0 0.0
        %1670 = vmatprep.subr.mxu0 0.0
        %1671 = vmatpush1.msra.mxu0 0.0
        %1672 = vmatprep.mubr.f32.mxu0 0.0
        %1673 = vmatmul.mubr.f32.gmra.mrb[0].mxu0 %v1606
        %v1674 = vpop.f32.mrb[0].mxu0
        %v1675 = vadd.f32 0.0, %v1674
        %v1676 = vpop.f32.mrb[0].mxu0
        %1677 = vdwg.mxu0
        %v1678 = vadd.f32 %v1604, %v1675
        %v1679 = vrot.slane %v1356, 4
        %v1680 = vsel %vm1382, %v1679, 0
        %1682 = vmatprep.subr.mxu0 0.0
        %1683 = vmatpush1.msra.mxu0 %v1369
        %1684 = vmatprep.subr.mxu0 0.0
        %1685 = vmatpush1.msra.mxu0 %v1370
        %1686 = vmatprep.subr.mxu0 0.0
        %1687 = vmatpush1.msra.mxu0 %v1371
        %1688 = vmatprep.subr.mxu0 0.0
        %1689 = vmatpush1.msra.mxu0 0.0
        %1690 = vmatprep.subr.mxu0 0.0
        %1691 = vmatpush1.msra.mxu0 0.0
        %1692 = vmatprep.subr.mxu0 0.0
        %1693 = vmatpush1.msra.mxu0 0.0
        %1694 = vmatprep.subr.mxu0 0.0
        %1695 = vmatpush1.msra.mxu0 0.0
        %1696 = vmatprep.subr.mxu0 0.0
        %1697 = vmatpush1.msra.mxu0 0.0
        %1698 = vmatprep.subr.mxu0 0.0
        %1699 = vmatpush1.msra.mxu0 0.0
        %1700 = vmatprep.subr.mxu0 0.0
        %1701 = vmatpush1.msra.mxu0 0.0
        %1702 = vmatprep.subr.mxu0 0.0
        %1703 = vmatpush1.msra.mxu0 0.0
        %1704 = vmatprep.subr.mxu0 0.0
        %1705 = vmatpush1.msra.mxu0 0.0
        %1706 = vmatprep.subr.mxu0 0.0
        %1707 = vmatpush1.msra.mxu0 0.0
        %1708 = vmatprep.subr.mxu0 0.0
        %1709 = vmatpush1.msra.mxu0 0.0
        %1710 = vmatprep.subr.mxu0 0.0
        %1711 = vmatpush1.msra.mxu0 0.0
        %1712 = vmatprep.subr.mxu0 0.0
        %1713 = vmatpush1.msra.mxu0 0.0
        %1714 = vmatprep.subr.mxu0 0.0
        %1715 = vmatpush1.msra.mxu0 0.0
        %1716 = vmatprep.subr.mxu0 0.0
        %1717 = vmatpush1.msra.mxu0 0.0
        %1718 = vmatprep.subr.mxu0 0.0
        %1719 = vmatpush1.msra.mxu0 0.0
        %1720 = vmatprep.subr.mxu0 0.0
        %1721 = vmatpush1.msra.mxu0 0.0
        %1722 = vmatprep.subr.mxu0 0.0
        %1723 = vmatpush1.msra.mxu0 0.0
        %1724 = vmatprep.subr.mxu0 0.0
        %1725 = vmatpush1.msra.mxu0 0.0
        %1726 = vmatprep.subr.mxu0 0.0
        %1727 = vmatpush1.msra.mxu0 0.0
        %1728 = vmatprep.subr.mxu0 0.0
        %1729 = vmatpush1.msra.mxu0 0.0
        %1730 = vmatprep.subr.mxu0 0.0
        %1731 = vmatpush1.msra.mxu0 0.0
        %1732 = vmatprep.subr.mxu0 0.0
        %1733 = vmatpush1.msra.mxu0 0.0
        %1734 = vmatprep.subr.mxu0 0.0
        %1735 = vmatpush1.msra.mxu0 0.0
        %1736 = vmatprep.subr.mxu0 0.0
        %1737 = vmatpush1.msra.mxu0 0.0
        %1738 = vmatprep.subr.mxu0 0.0
        %1739 = vmatpush1.msra.mxu0 0.0
        %1740 = vmatprep.subr.mxu0 0.0
        %1741 = vmatpush1.msra.mxu0 0.0
        %1742 = vmatprep.subr.mxu0 0.0
        %1743 = vmatpush1.msra.mxu0 0.0
        %1744 = vmatprep.subr.mxu0 0.0
        %1745 = vmatpush1.msra.mxu0 0.0
        %1746 = vmatprep.mubr.f32.mxu0 0.0
        %1747 = vmatmul.mubr.f32.gmra.mrb[0].mxu0 %v1680
        %v1748 = vpop.f32.mrb[0].mxu0
        %v1749 = vadd.f32 0.0, %v1748
        %v1750 = vpop.f32.mrb[0].mxu0
        %1751 = vdwg.mxu0
        %v1752 = vadd.f32 %v1678, %v1749
        %v1753 = vrot.slane %v1356, 5
        %v1754 = vsel %vm1382, %v1753, 0
        %1756 = vmatprep.subr.mxu0 0.0
        %1757 = vmatpush1.msra.mxu0 %v1372
        %1758 = vmatprep.subr.mxu0 0.0
        %1759 = vmatpush1.msra.mxu0 %v1373
        %1760 = vmatprep.subr.mxu0 0.0
        %1761 = vmatpush1.msra.mxu0 %v1374
        %1762 = vmatprep.subr.mxu0 0.0
        %1763 = vmatpush1.msra.mxu0 0.0
        %1764 = vmatprep.subr.mxu0 0.0
        %1765 = vmatpush1.msra.mxu0 0.0
        %1766 = vmatprep.subr.mxu0 0.0
        %1767 = vmatpush1.msra.mxu0 0.0
        %1768 = vmatprep.subr.mxu0 0.0
        %1769 = vmatpush1.msra.mxu0 0.0
        %1770 = vmatprep.subr.mxu0 0.0
        %1771 = vmatpush1.msra.mxu0 0.0
        %1772 = vmatprep.subr.mxu0 0.0
        %1773 = vmatpush1.msra.mxu0 0.0
        %1774 = vmatprep.subr.mxu0 0.0
        %1775 = vmatpush1.msra.mxu0 0.0
        %1776 = vmatprep.subr.mxu0 0.0
        %1777 = vmatpush1.msra.mxu0 0.0
        %1778 = vmatprep.subr.mxu0 0.0
        %1779 = vmatpush1.msra.mxu0 0.0
        %1780 = vmatprep.subr.mxu0 0.0
        %1781 = vmatpush1.msra.mxu0 0.0
        %1782 = vmatprep.subr.mxu0 0.0
        %1783 = vmatpush1.msra.mxu0 0.0
        %1784 = vmatprep.subr.mxu0 0.0
        %1785 = vmatpush1.msra.mxu0 0.0
        %1786 = vmatprep.subr.mxu0 0.0
        %1787 = vmatpush1.msra.mxu0 0.0
        %1788 = vmatprep.subr.mxu0 0.0
        %1789 = vmatpush1.msra.mxu0 0.0
        %1790 = vmatprep.subr.mxu0 0.0
        %1791 = vmatpush1.msra.mxu0 0.0
        %1792 = vmatprep.subr.mxu0 0.0
        %1793 = vmatpush1.msra.mxu0 0.0
        %1794 = vmatprep.subr.mxu0 0.0
        %1795 = vmatpush1.msra.mxu0 0.0
        %1796 = vmatprep.subr.mxu0 0.0
        %1797 = vmatpush1.msra.mxu0 0.0
        %1798 = vmatprep.subr.mxu0 0.0
        %1799 = vmatpush1.msra.mxu0 0.0
        %1800 = vmatprep.subr.mxu0 0.0
        %1801 = vmatpush1.msra.mxu0 0.0
        %1802 = vmatprep.subr.mxu0 0.0
        %1803 = vmatpush1.msra.mxu0 0.0
        %1804 = vmatprep.subr.mxu0 0.0
        %1805 = vmatpush1.msra.mxu0 0.0
        %1806 = vmatprep.subr.mxu0 0.0
        %1807 = vmatpush1.msra.mxu0 0.0
        %1808 = vmatprep.subr.mxu0 0.0
        %1809 = vmatpush1.msra.mxu0 0.0
        %1810 = vmatprep.subr.mxu0 0.0
        %1811 = vmatpush1.msra.mxu0 0.0
        %1812 = vmatprep.subr.mxu0 0.0
        %1813 = vmatpush1.msra.mxu0 0.0
        %1814 = vmatprep.subr.mxu0 0.0
        %1815 = vmatpush1.msra.mxu0 0.0
        %1816 = vmatprep.subr.mxu0 0.0
        %1817 = vmatpush1.msra.mxu0 0.0
        %1818 = vmatprep.subr.mxu0 0.0
        %1819 = vmatpush1.msra.mxu0 0.0
        %1820 = vmatprep.mubr.f32.mxu0 0.0
        %1821 = vmatmul.mubr.f32.gmra.mrb[0].mxu0 %v1754
        %v1822 = vpop.f32.mrb[0].mxu0
        %v1823 = vadd.f32 0.0, %v1822
        %v1824 = vpop.f32.mrb[0].mxu0
        %1825 = vdwg.mxu0
        %v1826 = vadd.f32 %v1752, %v1823
        %v1827 = vrot.slane %v1356, 6
        %v1828 = vsel %vm1382, %v1827, 0
        %1830 = vmatprep.subr.mxu0 0.0
        %1831 = vmatpush1.msra.mxu0 %v1375
        %1832 = vmatprep.subr.mxu0 0.0
        %1833 = vmatpush1.msra.mxu0 %v1376
        %1834 = vmatprep.subr.mxu0 0.0
        %1835 = vmatpush1.msra.mxu0 %v1377
        %1836 = vmatprep.subr.mxu0 0.0
        %1837 = vmatpush1.msra.mxu0 0.0
        %1838 = vmatprep.subr.mxu0 0.0
        %1839 = vmatpush1.msra.mxu0 0.0
        %1840 = vmatprep.subr.mxu0 0.0
        %1841 = vmatpush1.msra.mxu0 0.0
        %1842 = vmatprep.subr.mxu0 0.0
        %1843 = vmatpush1.msra.mxu0 0.0
        %1844 = vmatprep.subr.mxu0 0.0
        %1845 = vmatpush1.msra.mxu0 0.0
        %1846 = vmatprep.subr.mxu0 0.0
        %1847 = vmatpush1.msra.mxu0 0.0
        %1848 = vmatprep.subr.mxu0 0.0
        %1849 = vmatpush1.msra.mxu0 0.0
        %1850 = vmatprep.subr.mxu0 0.0
        %1851 = vmatpush1.msra.mxu0 0.0
        %1852 = vmatprep.subr.mxu0 0.0
        %1853 = vmatpush1.msra.mxu0 0.0
        %1854 = vmatprep.subr.mxu0 0.0
        %1855 = vmatpush1.msra.mxu0 0.0
        %1856 = vmatprep.subr.mxu0 0.0
        %1857 = vmatpush1.msra.mxu0 0.0
        %1858 = vmatprep.subr.mxu0 0.0
        %1859 = vmatpush1.msra.mxu0 0.0
        %1860 = vmatprep.subr.mxu0 0.0
        %1861 = vmatpush1.msra.mxu0 0.0
        %1862 = vmatprep.subr.mxu0 0.0
        %1863 = vmatpush1.msra.mxu0 0.0
        %1864 = vmatprep.subr.mxu0 0.0
        %1865 = vmatpush1.msra.mxu0 0.0
        %1866 = vmatprep.subr.mxu0 0.0
        %1867 = vmatpush1.msra.mxu0 0.0
        %1868 = vmatprep.subr.mxu0 0.0
        %1869 = vmatpush1.msra.mxu0 0.0
        %1870 = vmatprep.subr.mxu0 0.0
        %1871 = vmatpush1.msra.mxu0 0.0
        %1872 = vmatprep.subr.mxu0 0.0
        %1873 = vmatpush1.msra.mxu0 0.0
        %1874 = vmatprep.subr.mxu0 0.0
        %1875 = vmatpush1.msra.mxu0 0.0
        %1876 = vmatprep.subr.mxu0 0.0
        %1877 = vmatpush1.msra.mxu0 0.0
        %1878 = vmatprep.subr.mxu0 0.0
        %1879 = vmatpush1.msra.mxu0 0.0
        %1880 = vmatprep.subr.mxu0 0.0
        %1881 = vmatpush1.msra.mxu0 0.0
        %1882 = vmatprep.subr.mxu0 0.0
        %1883 = vmatpush1.msra.mxu0 0.0
        %1884 = vmatprep.subr.mxu0 0.0
        %1885 = vmatpush1.msra.mxu0 0.0
        %1886 = vmatprep.subr.mxu0 0.0
        %1887 = vmatpush1.msra.mxu0 0.0
        %1888 = vmatprep.subr.mxu0 0.0
        %1889 = vmatpush1.msra.mxu0 0.0
        %1890 = vmatprep.subr.mxu0 0.0
        %1891 = vmatpush1.msra.mxu0 0.0
        %1892 = vmatprep.subr.mxu0 0.0
        %1893 = vmatpush1.msra.mxu0 0.0
        %1894 = vmatprep.mubr.f32.mxu0 0.0
        %1895 = vmatmul.mubr.f32.gmra.mrb[0].mxu0 %v1828
        %v1896 = vpop.f32.mrb[0].mxu0
        %v1897 = vadd.f32 0.0, %v1896
        %v1898 = vpop.f32.mrb[0].mxu0
        %1899 = vdwg.mxu0
        %v1900 = vadd.f32 %v1826, %v1897
        %v1901 = vrot.slane %v1356, 7
        %v1902 = vsel %vm1382, %v1901, 0
        %1904 = vmatprep.subr.mxu0 0.0
        %1905 = vmatpush1.msra.mxu0 %v1378
        %1906 = vmatprep.subr.mxu0 0.0
        %1907 = vmatpush1.msra.mxu0 %v1379
        %1908 = vmatprep.subr.mxu0 0.0
        %1909 = vmatpush1.msra.mxu0 %v1380
        %1910 = vmatprep.subr.mxu0 0.0
        %1911 = vmatpush1.msra.mxu0 0.0
        %1912 = vmatprep.subr.mxu0 0.0
        %1913 = vmatpush1.msra.mxu0 0.0
        %1914 = vmatprep.subr.mxu0 0.0
        %1915 = vmatpush1.msra.mxu0 0.0
        %1916 = vmatprep.subr.mxu0 0.0
        %1917 = vmatpush1.msra.mxu0 0.0
        %1918 = vmatprep.subr.mxu0 0.0
        %1919 = vmatpush1.msra.mxu0 0.0
        %1920 = vmatprep.subr.mxu0 0.0
        %1921 = vmatpush1.msra.mxu0 0.0
        %1922 = vmatprep.subr.mxu0 0.0
        %1923 = vmatpush1.msra.mxu0 0.0
        %1924 = vmatprep.subr.mxu0 0.0
        %1925 = vmatpush1.msra.mxu0 0.0
        %1926 = vmatprep.subr.mxu0 0.0
        %1927 = vmatpush1.msra.mxu0 0.0
        %1928 = vmatprep.subr.mxu0 0.0
        %1929 = vmatpush1.msra.mxu0 0.0
        %1930 = vmatprep.subr.mxu0 0.0
        %1931 = vmatpush1.msra.mxu0 0.0
        %1932 = vmatprep.subr.mxu0 0.0
        %1933 = vmatpush1.msra.mxu0 0.0
        %1934 = vmatprep.subr.mxu0 0.0
        %1935 = vmatpush1.msra.mxu0 0.0
        %1936 = vmatprep.subr.mxu0 0.0
        %1937 = vmatpush1.msra.mxu0 0.0
        %1938 = vmatprep.subr.mxu0 0.0
        %1939 = vmatpush1.msra.mxu0 0.0
        %1940 = vmatprep.subr.mxu0 0.0
        %1941 = vmatpush1.msra.mxu0 0.0
        %1942 = vmatprep.subr.mxu0 0.0
        %1943 = vmatpush1.msra.mxu0 0.0
        %1944 = vmatprep.subr.mxu0 0.0
        %1945 = vmatpush1.msra.mxu0 0.0
        %1946 = vmatprep.subr.mxu0 0.0
        %1947 = vmatpush1.msra.mxu0 0.0
        %1948 = vmatprep.subr.mxu0 0.0
        %1949 = vmatpush1.msra.mxu0 0.0
        %1950 = vmatprep.subr.mxu0 0.0
        %1951 = vmatpush1.msra.mxu0 0.0
        %1952 = vmatprep.subr.mxu0 0.0
        %1953 = vmatpush1.msra.mxu0 0.0
        %1954 = vmatprep.subr.mxu0 0.0
        %1955 = vmatpush1.msra.mxu0 0.0
        %1956 = vmatprep.subr.mxu0 0.0
        %1957 = vmatpush1.msra.mxu0 0.0
        %1958 = vmatprep.subr.mxu0 0.0
        %1959 = vmatpush1.msra.mxu0 0.0
        %1960 = vmatprep.subr.mxu0 0.0
        %1961 = vmatpush1.msra.mxu0 0.0
        %1962 = vmatprep.subr.mxu0 0.0
        %1963 = vmatpush1.msra.mxu0 0.0
        %1964 = vmatprep.subr.mxu0 0.0
        %1965 = vmatpush1.msra.mxu0 0.0
        %1966 = vmatprep.subr.mxu0 0.0
        %1967 = vmatpush1.msra.mxu0 0.0
        %1968 = vmatprep.mubr.f32.mxu0 0.0
        %1969 = vmatmul.mubr.f32.gmra.mrb[0].mxu0 %v1902
        %v1970 = vpop.f32.mrb[0].mxu0
        %v1971 = vadd.f32 0.0, %v1970
        %v1972 = vpop.f32.mrb[0].mxu0
        %1973 = vdwg.mxu0
        %v1974 = vadd.f32 %v1900, %v1971
        %v1975 = vld [vmem:[%s9] sm:$0xff]
        %v1976 = vld [vmem:[%s9 + $0x8] sm:$0xff]
        %v1977 = vld [vmem:[%s10] sm:$0x1]
        %vm1978 = vcmask 130048
        %v1980 = vsel %vm1978, %v1974, 0
        %1982 = vmatprep.subr.mxu0 0.0
        %1983 = vmatpush1.msra.mxu0 %v1975
        %1984 = vmatprep.subr.mxu0 0.0
        %1985 = vmatpush1.msra.mxu0 %v1976
        %1986 = vmatprep.subr.mxu0 0.0
        %1987 = vmatpush1.msra.mxu0 0.0
        %1988 = vmatprep.subr.mxu0 0.0
        %1989 = vmatpush1.msra.mxu0 0.0
        %1990 = vmatprep.subr.mxu0 0.0
        %1991 = vmatpush1.msra.mxu0 0.0
        %1992 = vmatprep.subr.mxu0 0.0
        %1993 = vmatpush1.msra.mxu0 0.0
        %1994 = vmatprep.subr.mxu0 0.0
        %1995 = vmatpush1.msra.mxu0 0.0
        %1996 = vmatprep.subr.mxu0 0.0
        %1997 = vmatpush1.msra.mxu0 0.0
        %1998 = vmatprep.subr.mxu0 0.0
        %1999 = vmatpush1.msra.mxu0 0.0
        %2000 = vmatprep.subr.mxu0 0.0
        %2001 = vmatpush1.msra.mxu0 0.0
        %2002 = vmatprep.subr.mxu0 0.0
        %2003 = vmatpush1.msra.mxu0 0.0
        %2004 = vmatprep.subr.mxu0 0.0
        %2005 = vmatpush1.msra.mxu0 0.0
        %2006 = vmatprep.subr.mxu0 0.0
        %2007 = vmatpush1.msra.mxu0 0.0
        %2008 = vmatprep.subr.mxu0 0.0
        %2009 = vmatpush1.msra.mxu0 0.0
        %2010 = vmatprep.subr.mxu0 0.0
        %2011 = vmatpush1.msra.mxu0 0.0
        %2012 = vmatprep.subr.mxu0 0.0
        %2013 = vmatpush1.msra.mxu0 0.0
        %2014 = vmatprep.subr.mxu0 0.0
        %2015 = vmatpush1.msra.mxu0 0.0
        %2016 = vmatprep.subr.mxu0 0.0
        %2017 = vmatpush1.msra.mxu0 0.0
        %2018 = vmatprep.subr.mxu0 0.0
        %2019 = vmatpush1.msra.mxu0 0.0
        %2020 = vmatprep.subr.mxu0 0.0
        %2021 = vmatpush1.msra.mxu0 0.0
        %2022 = vmatprep.subr.mxu0 0.0
        %2023 = vmatpush1.msra.mxu0 0.0
        %2024 = vmatprep.subr.mxu0 0.0
        %2025 = vmatpush1.msra.mxu0 0.0
        %2026 = vmatprep.subr.mxu0 0.0
        %2027 = vmatpush1.msra.mxu0 0.0
        %2028 = vmatprep.subr.mxu0 0.0
        %2029 = vmatpush1.msra.mxu0 0.0
        %2030 = vmatprep.subr.mxu0 0.0
        %2031 = vmatpush1.msra.mxu0 0.0
        %2032 = vmatprep.subr.mxu0 0.0
        %2033 = vmatpush1.msra.mxu0 0.0
        %2034 = vmatprep.subr.mxu0 0.0
        %2035 = vmatpush1.msra.mxu0 0.0
        %2036 = vmatprep.subr.mxu0 0.0
        %2037 = vmatpush1.msra.mxu0 0.0
        %2038 = vmatprep.subr.mxu0 0.0
        %2039 = vmatpush1.msra.mxu0 0.0
        %2040 = vmatprep.subr.mxu0 0.0
        %2041 = vmatpush1.msra.mxu0 0.0
        %2042 = vmatprep.subr.mxu0 0.0
        %2043 = vmatpush1.msra.mxu0 0.0
        %2044 = vmatprep.subr.mxu0 0.0
        %2045 = vmatpush1.msra.mxu0 0.0
        %2046 = vmatprep.mubr.f32.mxu0 0.0
        %2047 = vmatmul.mubr.f32.gmra.mrb[0].mxu0 %v1980
        %v2048 = vpop.f32.mrb[0].mxu0
        %v2049 = vadd.f32 %v1977, %v2048
        %v2050 = vpop.f32.mrb[0].mxu0
        %2051 = vdwg.mxu0
        %vm2052 = vcmask 32768
        %2053 = vst.msk [vmem:[%s393] sm:$0x1] %vm2052, %v2049
        %s2054 = sand.u32 %s270, 1
        %s2055 = scalar_lea.sflag [#allocation4], %s2054
        %s2056 = sand.u32 %s270, 1
        %s2057 = scalar_lea.vmem [#allocation5], %s2056
        // Predicated region
        $region69: #{tpu_custom_call.1} parent=63 // pred_check
          %p2058 = pneg %p280
        $region70: #{tpu_custom_call.1} parent=63 // pred_check_branch
          %2060 = sbr.rel (%p2058) target = $region72
        $region71: #{tpu_custom_call.1} parent=63 // pred_region
          %s2062 = ssub.s32 16, 16
          %2063 = vsyncadd %s2055, %s2062
          %s2064 = smul.addr %s26, 16
          %s2065 = scalar_lea.hbm %s11, %s2064
          %s2067 = sshll.u32 %s2057, 4
          %s2068 = int_to_ptr.vmem [resolvable:$true] %s2067
          %2070 = dma.vmem_to_hbm [thread:$0]  %s2068, 16, %s2065, %s2055
        $region72: #{tpu_custom_call.1} parent=63 // pred_fallthru
          _
      $region64: #{tpu_custom_call.1} parent=5 // pred_fallthru
        _
      %p2071 = scmp.le.s32.totalorder 2, %s21
      // Predicated region
      $region73: #{tpu_custom_call.1} parent=5 // pred_check
        %p2072 = pneg %p2071
      $region74: #{tpu_custom_call.1} parent=5 // pred_check_branch
        %2074 = sbr.rel (%p2072) target = $region76
      $region75: #{tpu_custom_call.1} parent=5 // pred_region
        %s2075 = ssub.s32 %s21, 2
        // Predicated region
        $region77: #{tpu_custom_call.1} parent=75 // pred_check
          %p2076 = pneg %p286
        $region78: #{tpu_custom_call.1} parent=75 // pred_check_branch
          %2078 = sbr.rel (%p2076) target = $region80
        $region79: #{tpu_custom_call.1} parent=75 // pred_region
          %s2079 = sand.u32 %s271, 1
          %s2080 = scalar_lea.sflag [#allocation4], %s2079
          %s2081 = sand.u32 %s271, 1
          %s2082 = scalar_lea.vmem [#allocation5], %s2081
          %2083 = dma.done %s2080, 16
        $region80: #{tpu_custom_call.1} parent=75 // pred_fallthru
          _
      $region76: #{tpu_custom_call.1} parent=5 // pred_fallthru
        _
    $region6: #{tpu_custom_call.1} parent=1 // loop_footer
      %s25 = sadd.s32 1, %s21
    $region7: #{tpu_custom_call.1} parent=1 // loop_footer_branch
      %20 = sbr.rel target = $region3
    $region8: #{tpu_custom_call.1} parent=1 // loop_exit
      _
    %2084 = vsyncpa [#allocation3], 1
    %s2085 = scalar_lea.sflag [#allocation3], 1
    %2086 = vsyncpa %s2085, 1
    %2087 = vsyncpa [#allocation4], 1
    %s2088 = scalar_lea.sflag [#allocation4], 1
    %2089 = vsyncpa %s2088, 1

</llo_original>
